<compile_context>
chip_gen: v6e
topology: v6e:2x2x1
jax: 0.10.0
libtpu: 0.0.40
codegen_flags: <defaults>
</compile_context>

<pallas_src>
import math

import jax
import jax.numpy as jnp
import numpy as np
from jax import lax
from jax.experimental import pallas as pl
from jax.experimental.pallas import tpu as pltpu


def _round_up(x, m):
    return ((x + m - 1) // m) * m


def cq_attention_kernel(c_ref, q_ref, cmadd_ref, qmadd_ref,
                        w4c_ref, w4m_ref, w4q_ref, out_ref):
    Bt, D, _ = c_ref.shape
    f32 = jnp.float32
    bf16 = jnp.bfloat16

    w4c = w4c_ref[...]            # (D, 1) f32
    w4m = w4m_ref[...]            # (D, 1) f32
    w4q = w4q_ref[...]            # (1, D) bf16

    # TODO(synk): dropout inside trilinear_for_attention is training-mode only;
    # this kernel implements the eval-mode forward.

    # Static (fully unrolled) loop over the batch rows packed into this step.
    for b in range(Bt):
        C = c_ref[b]              # (D, Lcp) bf16, channel-major context
        Q = q_ref[b]              # (D, Lqp) bf16, channel-major question
        cm_add = cmadd_ref[b]     # (1, Lcp) f32 additive context mask
        qm_add = qmadd_ref[b]     # (1, Lqp) f32 additive question mask (+bias)

        # qhat[d, j] = w4mlu[d] * Q[d, j] + w4C[d]  (f32 compute, one bf16 cast)
        qhat_bf = (Q.astype(f32) * w4m + w4c).astype(bf16)

        # row[j] = <w4Q, Q[:, j]> — varies along the S1 softmax axis so it must
        # be added; the scalar bias is already folded into qm_add by the wrapper.
        row = lax.dot_general(w4q, Q, (((1,), (0,)), ((), ())),
                              preferred_element_type=f32)            # (1, Lqp)

        # S[i, j] = sum_d C[d, i] * qhat[d, j]   (contains <C_i, w4C>)
        S = lax.dot_general(C, qhat_bf, (((0,), (0,)), ((), ())),
                            preferred_element_type=f32)              # (Lcp, Lqp)

        # S1: question-axis (lane) softmax with additive mask.
        s1_logits = S + row + qm_add
        s1 = jnp.exp(s1_logits - jnp.max(s1_logits, axis=-1, keepdims=True))
        s1 = s1 * pl.reciprocal(jnp.sum(s1, axis=-1, keepdims=True), approx=False)

        # S2^T via a *second MXU matmul* instead of an XLU transpose of S:
        # St[j, i] = sum_d qhat[d, j] * C[d, i] = S[i, j] - row[j].  The dropped
        # row / bias terms are constant along the context softmax axis, so the
        # softmax is unchanged.
        St = lax.dot_general(qhat_bf, C, (((0,), (0,)), ((), ())),
                             preferred_element_type=f32)             # (Lqp, Lcp)
        s2_logits = St + cm_add
        s2t = jnp.exp(s2_logits - jnp.max(s2_logits, axis=-1, keepdims=True))
        s2t = s2t * pl.reciprocal(jnp.sum(s2t, axis=-1, keepdims=True), approx=False)

        # Hoisted bf16 casts (each operand cast exactly once).
        s1_bf = s1.astype(bf16)
        s2t_bf = s2t.astype(bf16)

        # A^T = Q @ S1^T                                     -> (D, Lcp)
        A = lax.dot_general(Q, s1_bf, (((1,), (1,)), ((), ())),
                            preferred_element_type=f32)

        # B^T = (C @ S2) @ S1^T, reassociated (no (Lc, Lc) intermediate):
        #   QC = C (D, Lcp) contracted with S2^T (Lqp, Lcp) over Lc -> (D, Lqp)
        QC = lax.dot_general(C, s2t_bf, (((1,), (1,)), ((), ())),
                             preferred_element_type=f32)
        Bm = lax.dot_general(QC.astype(bf16), s1_bf, (((1,), (1,)), ((), ())),
                             preferred_element_type=f32)             # (D, Lcp)

        # Four D-wide slabs — unmasked, 128-lane-aligned stores.
        Cf = C.astype(f32)
        odt = out_ref.dtype
        out_ref[b, 0:D, :] = C.astype(odt)
        out_ref[b, D:2 * D, :] = A.astype(odt)
        out_ref[b, 2 * D:3 * D, :] = (Cf * A).astype(odt)
        out_ref[b, 3 * D:4 * D, :] = (Cf * Bm).astype(odt)


def cq_attention(C, Q, Cmask, Qmask, w4C, w4Q, w4mlu, bias, *,
                 out_dtype=jnp.bfloat16, lane_multiple=128, block_b=None,
                 vmem_limit_bytes=48 * 1024 * 1024):
    """C: (B, D, Lc), Q: (B, D, Lq), Cmask: (B, Lc), Qmask: (B, Lq).

    Returns (B, 4*D, Lc) in `out_dtype` (channel-major, matching the PyTorch
    module's output layout).  Internally Lc / Lq are zero-padded to a multiple
    of `lane_multiple` (128; use 256 on v6e/v7x if the matmuls ever dominate)
    so every vreg, MXU pass and store is lane-dense.
    """
    B, D, Lc = C.shape
    Lq = Q.shape[2]
    Lcp = _round_up(Lc, lane_multiple)
    Lqp = _round_up(Lq, lane_multiple)

    bf16 = jnp.bfloat16
    f32 = jnp.float32

    # bf16 activations, zero-padded on the lane axis (padding is masked out).
    C_bf = jnp.pad(C.astype(bf16), ((0, 0), (0, 0), (0, Lcp - Lc)))
    Q_bf = jnp.pad(Q.astype(bf16), ((0, 0), (0, 0), (0, Lqp - Lq)))

    # Additive masks: mask==1 -> 0, mask==0 (including padding) -> -1e30.
    cm = jnp.pad(Cmask.astype(f32), ((0, 0), (0, Lcp - Lc)))
    qm = jnp.pad(Qmask.astype(f32), ((0, 0), (0, Lqp - Lq)))
    bias_s = jnp.asarray(bias, f32).reshape(())
    cm_add = ((cm - 1.0) * 1e30).reshape(B, 1, Lcp)
    # The scalar bias is constant along both softmax axes; folding it into the
    # question-axis additive mask keeps the S1 logits faithful at zero cost.
    qm_add = ((qm - 1.0) * 1e30 + bias_s).reshape(B, 1, Lqp)

    w4c = w4C.reshape(D, 1).astype(f32)
    w4m = w4mlu.reshape(D, 1).astype(f32)
    w4q = w4Q.reshape(1, D).astype(bf16)

    # ---- choose how many batch rows to pack per grid step -----------------
    if block_b is None:
        out_bytes = np.dtype(out_dtype).itemsize
        per_batch = (
            2 * (D * Lcp + D * Lqp) * 2                  # bf16 C/Q blocks, double-buffered
            + 2 * 4 * D * Lcp * out_bytes                # output block, double-buffered
            + 4 * (2 * Lcp * Lqp + 3 * D * Lcp + 2 * D * Lqp)  # f32 temporaries
        )
        budget = vmem_limit_bytes // 2                   # headroom (v7x: 64 MiB physical)
        block_b = 1
        for bt in range(1, B + 1):
            if B % bt:
                continue
            if B >= 2 and (B // bt) < 2:
                continue                                  # keep >= 2 steps for v7x's 2 TCs
            if bt * per_batch > budget:
                continue
            block_b = bt
    grid = (B // block_b,)

    out_padded = pl.pallas_call(
        cq_attention_kernel,
        out_shape=jax.ShapeDtypeStruct((B, 4 * D, Lcp), out_dtype),
        grid_spec=pltpu.PrefetchScalarGridSpec(
            num_scalar_prefetch=0,
            grid=grid,
            in_specs=[
                pl.BlockSpec((block_b, D, Lcp), lambda i: (i, 0, 0)),   # C  (bf16)
                pl.BlockSpec((block_b, D, Lqp), lambda i: (i, 0, 0)),   # Q  (bf16)
                pl.BlockSpec((block_b, 1, Lcp), lambda i: (i, 0, 0)),   # cmask (additive)
                pl.BlockSpec((block_b, 1, Lqp), lambda i: (i, 0, 0)),   # qmask (additive + bias)
                pl.BlockSpec((D, 1), lambda i: (0, 0)),                 # w4C
                pl.BlockSpec((D, 1), lambda i: (0, 0)),                 # w4mlu
                pl.BlockSpec((1, D), lambda i: (0, 0)),                 # w4Q (bf16)
            ],
            # TODO(synk): if xprof shows exposed output DMA at large shapes, add
            # pipeline_mode=pl.Buffered(3) on the output spec (and the C input).
            out_specs=pl.BlockSpec((block_b, 4 * D, Lcp), lambda i: (i, 0, 0)),
        ),
        compiler_params=pltpu.CompilerParams(
            dimension_semantics=("parallel",),
            vmem_limit_bytes=vmem_limit_bytes,
        ),
    )(C_bf, Q_bf, cm_add, qm_add, w4c, w4m, w4q)

    # Drop the lane padding (cheap slice; a fused consumer can instead take the
    # padded slab directly and skip this copy).
    return out_padded[:, :, :Lc]


def _reference(C, Q, Cmask, Qmask, w4C, w4Q, w4mlu, bias):
    """Pure-JAX f32 reference mirroring the PyTorch forward (eval mode)."""
    Ct = jnp.transpose(C, (0, 2, 1))
    Qt = jnp.transpose(Q, (0, 2, 1))
    B, Lc, D = Ct.shape
    Lq = Qt.shape[1]
    sub0 = Ct @ w4C                                     # (B, Lc, 1)
    sub1 = jnp.transpose(Qt @ w4Q, (0, 2, 1))           # (B, 1, Lq)
    sub2 = (Ct * w4mlu) @ jnp.transpose(Qt, (0, 2, 1))  # (B, Lc, Lq)
    S = sub0 + sub1 + sub2 + bias
    cm = Cmask.reshape(B, Lc, 1).astype(jnp.float32)
    qm = Qmask.reshape(B, 1, Lq).astype(jnp.float32)
    S1 = jax.nn.softmax(qm * S + -1e30 * (1 - qm), axis=2)
    S2 = jax.nn.softmax(cm * S + -1e30 * (1 - cm), axis=1)
    A = S1 @ Qt
    Bm = (S1 @ jnp.transpose(S2, (0, 2, 1))) @ Ct
    out = jnp.concatenate([Ct, A, Ct * A, Ct * Bm], axis=2)
    return jnp.transpose(out, (0, 2, 1))


if __name__ == "__main__":
    # config: enc_filters=32, para_limit=16, ques_limit=8, batch=2
    B, D, Lc, Lq = 2, 32, 16, 8
    key = jax.random.PRNGKey(0)
    kc, kq, kw1, kw2, kw3 = jax.random.split(key, 5)

    # Inputs in PyTorch layout: (B, enc_filters, seq_len)
    C = jax.random.normal(kc, (B, D, Lc), dtype=jnp.float32)
    Q = jax.random.normal(kq, (B, D, Lq), dtype=jnp.float32)

    # Masks: 1 for valid positions, 0 for padding.
    Cmask = (jnp.arange(Lc)[None, :] < jnp.array([[12], [16]])).astype(jnp.float32)
    Qmask = (jnp.arange(Lq)[None, :] < jnp.array([[6], [5]])).astype(jnp.float32)

    # Deterministic xavier_uniform-style parameter init (same shapes as __init__).
    bnd_c = math.sqrt(6.0 / (D + 1))          # w4C / w4Q: (D, 1)
    bnd_m = math.sqrt(6.0 / (2 * D))          # w4mlu: (1, 1, D)
    w4C = jax.random.uniform(kw1, (D, 1), jnp.float32, -bnd_c, bnd_c)
    w4Q = jax.random.uniform(kw2, (D, 1), jnp.float32, -bnd_c, bnd_c)
    w4mlu = jax.random.uniform(kw3, (1, 1, D), jnp.float32, -bnd_m, bnd_m)
    bias = jnp.zeros((1,), jnp.float32)

    out = jax.block_until_ready(cq_attention(C, Q, Cmask, Qmask, w4C, w4Q, w4mlu, bias))
    ref = jax.block_until_ready(_reference(C, Q, Cmask, Qmask, w4C, w4Q, w4mlu, bias))

    assert out.shape == (B, 4 * D, Lc), out.shape
    # Tolerance reflects deliberate bf16 HBM I/O, bf16 MXU operands (f32
    # accumulation) and the bf16 output slab vs. the pure-f32 reference.
    np.testing.assert_allclose(np.asarray(out.astype(jnp.float32)), np.asarray(ref),
                               rtol=4e-2, atol=4e-2)

    print("KERNEL_OK")
</pallas_src>

<mosaic_0001>
module attributes {stable_mosaic.version = 11 : i64} {
  func.func @cq_attention_kernel(%arg0: i32, %arg1: memref<1x32x128xbf16, #tpu.memory_space<vmem>>, %arg2: memref<1x32x128xbf16, #tpu.memory_space<vmem>>, %arg3: memref<1x1x128xf32, #tpu.memory_space<vmem>>, %arg4: memref<1x1x128xf32, #tpu.memory_space<vmem>>, %arg5: memref<32x1xf32, #tpu.memory_space<vmem>>, %arg6: memref<32x1xf32, #tpu.memory_space<vmem>>, %arg7: memref<1x32xbf16, #tpu.memory_space<vmem>>, %arg8: memref<1x128x128xbf16, #tpu.memory_space<vmem>>) attributes {dimension_semantics = [#tpu.dimension_semantics<parallel>], iteration_bounds = array<i64: 2>, scalar_prefetch = 0 : i64, scratch_operands = 0 : i64, tpu.core_type = #tpu.core_type<tc>, window_params = [{transform_indices = @transform_0, window_bounds = array<i64: 1, 32, 128>}, {transform_indices = @transform_1, window_bounds = array<i64: 1, 32, 128>}, {transform_indices = @transform_2, window_bounds = array<i64: 1, 1, 128>}, {transform_indices = @transform_3, window_bounds = array<i64: 1, 1, 128>}, {pipeline_mode = #tpu.pipeline_mode<synchronous>, transform_indices = @transform_4, window_bounds = array<i64: 32, 1>}, {pipeline_mode = #tpu.pipeline_mode<synchronous>, transform_indices = @transform_5, window_bounds = array<i64: 32, 1>}, {pipeline_mode = #tpu.pipeline_mode<synchronous>, transform_indices = @transform_6, window_bounds = array<i64: 1, 32>}, {transform_indices = @transform_7, window_bounds = array<i64: 1, 128, 128>}]} {
    %c0 = arith.constant 0 : index
    %c0_0 = arith.constant 0 : index
    %0 = vector.load %arg5[%c0, %c0_0] : memref<32x1xf32, #tpu.memory_space<vmem>>, vector<32x1xf32>
    %c0_1 = arith.constant 0 : index
    %c0_2 = arith.constant 0 : index
    %1 = vector.load %arg6[%c0_1, %c0_2] : memref<32x1xf32, #tpu.memory_space<vmem>>, vector<32x1xf32>
    %c0_3 = arith.constant 0 : index
    %c0_4 = arith.constant 0 : index
    %2 = vector.load %arg7[%c0_3, %c0_4] : memref<1x32xbf16, #tpu.memory_space<vmem>>, vector<1x32xbf16>
    %c0_5 = arith.constant 0 : index
    %c0_6 = arith.constant 0 : index
    %c0_7 = arith.constant 0 : index
    %3 = vector.load %arg1[%c0_5, %c0_6, %c0_7] : memref<1x32x128xbf16, #tpu.memory_space<vmem>>, vector<1x32x128xbf16>
    %4 = vector.shape_cast %3 : vector<1x32x128xbf16> to vector<32x128xbf16>
    %c0_8 = arith.constant 0 : index
    %c0_9 = arith.constant 0 : index
    %c0_10 = arith.constant 0 : index
    %5 = vector.load %arg2[%c0_8, %c0_9, %c0_10] : memref<1x32x128xbf16, #tpu.memory_space<vmem>>, vector<1x32x128xbf16>
    %6 = vector.shape_cast %5 : vector<1x32x128xbf16> to vector<32x128xbf16>
    %c0_11 = arith.constant 0 : index
    %c0_12 = arith.constant 0 : index
    %c0_13 = arith.constant 0 : index
    %7 = vector.load %arg3[%c0_11, %c0_12, %c0_13] : memref<1x1x128xf32, #tpu.memory_space<vmem>>, vector<1x1x128xf32>
    %8 = vector.shape_cast %7 : vector<1x1x128xf32> to vector<1x128xf32>
    %c0_14 = arith.constant 0 : index
    %c0_15 = arith.constant 0 : index
    %c0_16 = arith.constant 0 : index
    %9 = vector.load %arg4[%c0_14, %c0_15, %c0_16] : memref<1x1x128xf32, #tpu.memory_space<vmem>>, vector<1x1x128xf32>
    %10 = vector.shape_cast %9 : vector<1x1x128xf32> to vector<1x128xf32>
    %11 = arith.extf %6 : vector<32x128xbf16> to vector<32x128xf32>
    %12 = vector.broadcast %1 : vector<32x1xf32> to vector<32x128xf32>
    %13 = arith.mulf %11, %12 : vector<32x128xf32>
    %14 = vector.broadcast %0 : vector<32x1xf32> to vector<32x128xf32>
    %15 = arith.addf %13, %14 : vector<32x128xf32>
    %16 = arith.truncf %15 : vector<32x128xf32> to vector<32x128xbf16>
    %cst = arith.constant dense<0.000000e+00> : vector<1x128xf32>
    %17 = tpu.matmul %2, %6, %cst {dimension_numbers = #tpu.dot_dimension_numbers<[1], [0], [0], [1], [0, 0, 1, 1], [], []>} : vector<1x32xbf16>, vector<32x128xbf16>, vector<1x128xf32> -> vector<1x128xf32>
    %cst_17 = arith.constant dense<0.000000e+00> : vector<128x128xf32>
    %18 = tpu.matmul %4, %16, %cst_17 {dimension_numbers = #tpu.dot_dimension_numbers<[0], [0], [1], [1], [0, 1, 1, 1], [], []>} : vector<32x128xbf16>, vector<32x128xbf16>, vector<128x128xf32> -> vector<128x128xf32>
    %19 = vector.broadcast %17 : vector<1x128xf32> to vector<128x128xf32>
    %20 = arith.addf %18, %19 : vector<128x128xf32>
    %21 = vector.broadcast %10 : vector<1x128xf32> to vector<128x128xf32>
    %22 = arith.addf %20, %21 : vector<128x128xf32>
    %cst_18 = arith.constant dense<0xFF800000> : vector<128xf32>
    %23 = vector.multi_reduction <maximumf>, %22, %cst_18 [1] : vector<128x128xf32> to vector<128xf32>
    %24 = vector.shape_cast %23 : vector<128xf32> to vector<128x1xf32>
    %25 = vector.broadcast %24 : vector<128x1xf32> to vector<128x128xf32>
    %26 = arith.subf %22, %25 : vector<128x128xf32>
    %27 = math.exp %26 : vector<128x128xf32>
    %cst_19 = arith.constant dense<0.000000e+00> : vector<128xf32>
    %28 = vector.multi_reduction <add>, %27, %cst_19 [1] : vector<128x128xf32> to vector<128xf32>
    %29 = vector.shape_cast %28 : vector<128xf32> to vector<128x1xf32>
    %30 = tpu.reciprocal %29 : vector<128x1xf32> -> vector<128x1xf32>
    %31 = vector.broadcast %30 : vector<128x1xf32> to vector<128x128xf32>
    %32 = arith.mulf %27, %31 : vector<128x128xf32>
    %cst_20 = arith.constant dense<0.000000e+00> : vector<128x128xf32>
    %33 = tpu.matmul %16, %4, %cst_20 {dimension_numbers = #tpu.dot_dimension_numbers<[0], [0], [1], [1], [0, 1, 1, 1], [], []>} : vector<32x128xbf16>, vector<32x128xbf16>, vector<128x128xf32> -> vector<128x128xf32>
    %34 = vector.broadcast %8 : vector<1x128xf32> to vector<128x128xf32>
    %35 = arith.addf %33, %34 : vector<128x128xf32>
    %cst_21 = arith.constant dense<0xFF800000> : vector<128xf32>
    %36 = vector.multi_reduction <maximumf>, %35, %cst_21 [1] : vector<128x128xf32> to vector<128xf32>
    %37 = vector.shape_cast %36 : vector<128xf32> to vector<128x1xf32>
    %38 = vector.broadcast %37 : vector<128x1xf32> to vector<128x128xf32>
    %39 = arith.subf %35, %38 : vector<128x128xf32>
    %40 = math.exp %39 : vector<128x128xf32>
    %cst_22 = arith.constant dense<0.000000e+00> : vector<128xf32>
    %41 = vector.multi_reduction <add>, %40, %cst_22 [1] : vector<128x128xf32> to vector<128xf32>
    %42 = vector.shape_cast %41 : vector<128xf32> to vector<128x1xf32>
    %43 = tpu.reciprocal %42 : vector<128x1xf32> -> vector<128x1xf32>
    %44 = vector.broadcast %43 : vector<128x1xf32> to vector<128x128xf32>
    %45 = arith.mulf %40, %44 : vector<128x128xf32>
    %46 = arith.truncf %32 : vector<128x128xf32> to vector<128x128xbf16>
    %47 = arith.truncf %45 : vector<128x128xf32> to vector<128x128xbf16>
    %cst_23 = arith.constant dense<0.000000e+00> : vector<32x128xf32>
    %48 = tpu.matmul %6, %46, %cst_23 {dimension_numbers = #tpu.dot_dimension_numbers<[1], [1], [0], [0], [0, 0, 1, 0], [], []>} : vector<32x128xbf16>, vector<128x128xbf16>, vector<32x128xf32> -> vector<32x128xf32>
    %cst_24 = arith.constant dense<0.000000e+00> : vector<32x128xf32>
    %49 = tpu.matmul %4, %47, %cst_24 {dimension_numbers = #tpu.dot_dimension_numbers<[1], [1], [0], [0], [0, 0, 1, 0], [], []>} : vector<32x128xbf16>, vector<128x128xbf16>, vector<32x128xf32> -> vector<32x128xf32>
    %50 = arith.truncf %49 : vector<32x128xf32> to vector<32x128xbf16>
    %cst_25 = arith.constant dense<0.000000e+00> : vector<32x128xf32>
    %51 = tpu.matmul %50, %46, %cst_25 {dimension_numbers = #tpu.dot_dimension_numbers<[1], [1], [0], [0], [0, 0, 1, 0], [], []>} : vector<32x128xbf16>, vector<128x128xbf16>, vector<32x128xf32> -> vector<32x128xf32>
    %52 = arith.extf %4 : vector<32x128xbf16> to vector<32x128xf32>
    %c0_26 = arith.constant 0 : index
    %c0_27 = arith.constant 0 : index
    %c0_28 = arith.constant 0 : index
    %53 = vector.load %arg8[%c0_26, %c0_27, %c0_28] : memref<1x128x128xbf16, #tpu.memory_space<vmem>>, vector<1x32x128xbf16>
    %54 = vector.shape_cast %53 : vector<1x32x128xbf16> to vector<32x128xbf16>
    %55 = vector.shape_cast %4 : vector<32x128xbf16> to vector<1x32x128xbf16>
    tpu.vector_store %arg8[%c0_26, %c0_27, %c0_28], %55 {strides = array<i32>} : memref<1x128x128xbf16, #tpu.memory_space<vmem>>, vector<1x32x128xbf16>,
    %56 = arith.truncf %48 : vector<32x128xf32> to vector<32x128xbf16>
    %c0_29 = arith.constant 0 : index
    %c32 = arith.constant 32 : index
    %c0_30 = arith.constant 0 : index
    %57 = vector.load %arg8[%c0_29, %c32, %c0_30] : memref<1x128x128xbf16, #tpu.memory_space<vmem>>, vector<1x32x128xbf16>
    %58 = vector.shape_cast %57 : vector<1x32x128xbf16> to vector<32x128xbf16>
    %59 = vector.shape_cast %56 : vector<32x128xbf16> to vector<1x32x128xbf16>
    tpu.vector_store %arg8[%c0_29, %c32, %c0_30], %59 {strides = array<i32>} : memref<1x128x128xbf16, #tpu.memory_space<vmem>>, vector<1x32x128xbf16>,
    %60 = arith.mulf %52, %48 : vector<32x128xf32>
    %61 = arith.truncf %60 : vector<32x128xf32> to vector<32x128xbf16>
    %c0_31 = arith.constant 0 : index
    %c64 = arith.constant 64 : index
    %c0_32 = arith.constant 0 : index
    %62 = vector.load %arg8[%c0_31, %c64, %c0_32] : memref<1x128x128xbf16, #tpu.memory_space<vmem>>, vector<1x32x128xbf16>
    %63 = vector.shape_cast %62 : vector<1x32x128xbf16> to vector<32x128xbf16>
    %64 = vector.shape_cast %61 : vector<32x128xbf16> to vector<1x32x128xbf16>
    tpu.vector_store %arg8[%c0_31, %c64, %c0_32], %64 {strides = array<i32>} : memref<1x128x128xbf16, #tpu.memory_space<vmem>>, vector<1x32x128xbf16>,
    %65 = arith.mulf %52, %51 : vector<32x128xf32>
    %66 = arith.truncf %65 : vector<32x128xf32> to vector<32x128xbf16>
    %c0_33 = arith.constant 0 : index
    %c96 = arith.constant 96 : index
    %c0_34 = arith.constant 0 : index
    %67 = vector.load %arg8[%c0_33, %c96, %c0_34] : memref<1x128x128xbf16, #tpu.memory_space<vmem>>, vector<1x32x128xbf16>
    %68 = vector.shape_cast %67 : vector<1x32x128xbf16> to vector<32x128xbf16>
    %69 = vector.shape_cast %66 : vector<32x128xbf16> to vector<1x32x128xbf16>
    tpu.vector_store %arg8[%c0_33, %c96, %c0_34], %69 {strides = array<i32>} : memref<1x128x128xbf16, #tpu.memory_space<vmem>>, vector<1x32x128xbf16>,
    return
  }
  func.func @transform_0(%arg0: i32) -> (i32, i32, i32) {
    %c0_i32 = arith.constant 0 : i32
    %c0_i32_0 = arith.constant 0 : i32
    %c0_i32_1 = arith.constant 0 : i32
    return %arg0, %c0_i32, %c0_i32_0 : i32, i32, i32
  }
  func.func @transform_1(%arg0: i32) -> (i32, i32, i32) {
    %c0_i32 = arith.constant 0 : i32
    %c0_i32_0 = arith.constant 0 : i32
    %c0_i32_1 = arith.constant 0 : i32
    return %arg0, %c0_i32, %c0_i32_0 : i32, i32, i32
  }
  func.func @transform_2(%arg0: i32) -> (i32, i32, i32) {
    %c0_i32 = arith.constant 0 : i32
    %c0_i32_0 = arith.constant 0 : i32
    %c0_i32_1 = arith.constant 0 : i32
    return %arg0, %c0_i32, %c0_i32_0 : i32, i32, i32
  }
  func.func @transform_3(%arg0: i32) -> (i32, i32, i32) {
    %c0_i32 = arith.constant 0 : i32
    %c0_i32_0 = arith.constant 0 : i32
    %c0_i32_1 = arith.constant 0 : i32
    return %arg0, %c0_i32, %c0_i32_0 : i32, i32, i32
  }
  func.func @transform_4(%arg0: i32) -> (i32, i32) {
    %c0_i32 = arith.constant 0 : i32
    %c0_i32_0 = arith.constant 0 : i32
    %c0_i32_1 = arith.constant 0 : i32
    return %c0_i32, %c0_i32_0 : i32, i32
  }
  func.func @transform_5(%arg0: i32) -> (i32, i32) {
    %c0_i32 = arith.constant 0 : i32
    %c0_i32_0 = arith.constant 0 : i32
    %c0_i32_1 = arith.constant 0 : i32
    return %c0_i32, %c0_i32_0 : i32, i32
  }
  func.func @transform_6(%arg0: i32) -> (i32, i32) {
    %c0_i32 = arith.constant 0 : i32
    %c0_i32_0 = arith.constant 0 : i32
    %c0_i32_1 = arith.constant 0 : i32
    return %c0_i32, %c0_i32_0 : i32, i32
  }
  func.func @transform_7(%arg0: i32) -> (i32, i32, i32) {
    %c0_i32 = arith.constant 0 : i32
    %c0_i32_0 = arith.constant 0 : i32
    %c0_i32_1 = arith.constant 0 : i32
    return %arg0, %c0_i32, %c0_i32_0 : i32, i32, i32
  }
}

</mosaic_0001>

<llo_original>
// kernel: tpu_custom_call.1
$region0: #{tpu_custom_call.1}
  #allocation0 [shape = 'u32[]', space=smem, size = 0x4, offset = 0x4, fixed_abs, tag = 'smem constant byte address 0x4 - core index']
  #allocation1 [shape = 'u32[144,128]{1,0:T(1,128)}', space=vmem, size = 0x12000, scoped, tag = 'internal scratch']
  %s0 = inlined_call_operand.vmem [shape: bf16[2,32,128], index: 0, kind: input, shape index: {}]
  %s1 = inlined_call_operand.vmem [shape: bf16[2,32,128], index: 1, kind: input, shape index: {}]
  %s2 = inlined_call_operand.vmem [shape: f32[2,1,128], index: 2, kind: input, shape index: {}]
  %s3 = inlined_call_operand.vmem [shape: f32[2,1,128], index: 3, kind: input, shape index: {}]
  %s4 = inlined_call_operand.vmem [shape: f32[32,1], index: 4, kind: input, shape index: {}]
  %s5 = inlined_call_operand.vmem [shape: f32[32,1], index: 5, kind: input, shape index: {}]
  %s6 = inlined_call_operand.vmem [shape: bf16[1,32], index: 6, kind: input, shape index: {}]
  %s7 = inlined_call_operand.hbm [shape: bf16[2,128,128], index: 7, kind: output, shape index: {}]
  %s8 = sld [smem:[#allocation0]]
  $region61: #{tpu_custom_call.1} parent=0
    _
  %s10 = ssub.s32 1, %s8
  %s11 = scalar_select 0, %s10, %s8
  $region1: #{tpu_custom_call.1} parent=0
    #allocation2 [shape = 'u8[65536]{0}', space=vmem, size = 0x10000, scoped, tag = 'output window, operand 0']
    #allocation3 [shape = 's32[2]{0}', space=sflag, size = 0x8, scoped, tag = 'scoped memory for tpu_custom_call.1']
    %12 = vsyncpa [#allocation3], 0
    %s13 = scalar_lea.sflag [#allocation3], 1
    %14 = vsyncpa %s13, 0
    loop: start=0, step=1, limit=4
    $region2: #{tpu_custom_call.1} parent=1 // loop_pre_header
      _
    $region3: #{tpu_custom_call.1} parent=1 // loop_header
      %s16 = sphi 0, %s20
      %p17 = scmp.ge.s32.totalorder %s16, 4
      %s26 = sphi 0, %s28
      %s29 = sphi 0, %s26
      %s30 = sphi 0, %s29
      %s46 = sphi 0, %s30
      %s52 = sphi 0, %s54
      %s55 = sphi 0, %s52
      %s56 = sphi 0, %s55
      %s72 = sphi 0, %s56
      %s78 = sphi 0, %s80
      %s81 = sphi 0, %s78
      %s82 = sphi 0, %s81
      %s98 = sphi 0, %s82
      %s104 = sphi 0, %s106
      %s107 = sphi 0, %s104
      %s108 = sphi 0, %s107
      %s124 = sphi 0, %s108
      %s128 = sphi 0, %s128
      %s130 = sphi 0, %s128
      %s131 = sphi 0, %s130
      %s145 = sphi 0, %s131
      %s149 = sphi 0, %s149
      %s151 = sphi 0, %s149
      %s152 = sphi 0, %s151
      %s166 = sphi 0, %s152
      %s170 = sphi 0, %s170
      %s172 = sphi 0, %s170
      %s173 = sphi 0, %s172
      %s187 = sphi 0, %s173
      %s193 = sphi 0, %s195
      %s196 = sphi 0, %s193
      %s197 = sphi 0, %s196
      %s213 = sphi 0, %s197
    $region4: #{tpu_custom_call.1} parent=1 // loop_header_branch
      %19 = sbr.rel (%p17) target = $region8
    $region5: #{tpu_custom_call.1} parent=1 // loop_body
      %s21 = ssub.s32 %s16, 1
      %s22 = ssub.s32 %s16, 2
      %s23 = sadd.s32 %s16, 1
      %s24 = ssub.s32 %s16, %s23
      %p25 = scmp.eq.s32.totalorder %s24, 0
      %s27 = sadd.s32 %s26, 1
      %s28 = scalar_select %p25, %s26, %s27
      %p31 = pneg %p25
      %p32 = scmp.eq.s32.totalorder %s16, 1
      %p33 = por %p31, %p32
      %p34 = scmp.ne.s32.totalorder %s26, %s29
      %p35 = scmp.eq.s32.totalorder %s16, 0
      %p36 = por %p34, %p35
      %p37 = scmp.ne.s32.totalorder %s26, %s29
      %p38 = scmp.eq.s32.totalorder %s21, 1
      %p39 = por %p37, %p38
      %p40 = scmp.ne.s32.totalorder %s29, %s30
      %p41 = scmp.eq.s32.totalorder %s21, 0
      %p42 = por %p40, %p41
      %p43 = scmp.ne.s32.totalorder %s29, %s30
      %p44 = scmp.eq.s32.totalorder %s22, 1
      %p45 = por %p43, %p44
      %p47 = scmp.ne.s32.totalorder %s30, %s46
      %p48 = scmp.eq.s32.totalorder %s22, 0
      %p49 = por %p47, %p48
      %s50 = ssub.s32 %s16, %s23
      %p51 = scmp.eq.s32.totalorder %s50, 0
      %s53 = sadd.s32 %s52, 1
      %s54 = scalar_select %p51, %s52, %s53
      %p57 = pneg %p51
      %p58 = scmp.eq.s32.totalorder %s16, 1
      %p59 = por %p57, %p58
      %p60 = scmp.ne.s32.totalorder %s52, %s55
      %p61 = scmp.eq.s32.totalorder %s16, 0
      %p62 = por %p60, %p61
      %p63 = scmp.ne.s32.totalorder %s52, %s55
      %p64 = scmp.eq.s32.totalorder %s21, 1
      %p65 = por %p63, %p64
      %p66 = scmp.ne.s32.totalorder %s55, %s56
      %p67 = scmp.eq.s32.totalorder %s21, 0
      %p68 = por %p66, %p67
      %p69 = scmp.ne.s32.totalorder %s55, %s56
      %p70 = scmp.eq.s32.totalorder %s22, 1
      %p71 = por %p69, %p70
      %p73 = scmp.ne.s32.totalorder %s56, %s72
      %p74 = scmp.eq.s32.totalorder %s22, 0
      %p75 = por %p73, %p74
      %s76 = ssub.s32 %s16, %s23
      %p77 = scmp.eq.s32.totalorder %s76, 0
      %s79 = sadd.s32 %s78, 1
      %s80 = scalar_select %p77, %s78, %s79
      %p83 = pneg %p77
      %p84 = scmp.eq.s32.totalorder %s16, 1
      %p85 = por %p83, %p84
      %p86 = scmp.ne.s32.totalorder %s78, %s81
      %p87 = scmp.eq.s32.totalorder %s16, 0
      %p88 = por %p86, %p87
      %p89 = scmp.ne.s32.totalorder %s78, %s81
      %p90 = scmp.eq.s32.totalorder %s21, 1
      %p91 = por %p89, %p90
      %p92 = scmp.ne.s32.totalorder %s81, %s82
      %p93 = scmp.eq.s32.totalorder %s21, 0
      %p94 = por %p92, %p93
      %p95 = scmp.ne.s32.totalorder %s81, %s82
      %p96 = scmp.eq.s32.totalorder %s22, 1
      %p97 = por %p95, %p96
      %p99 = scmp.ne.s32.totalorder %s82, %s98
      %p100 = scmp.eq.s32.totalorder %s22, 0
      %p101 = por %p99, %p100
      %s102 = ssub.s32 %s16, %s23
      %p103 = scmp.eq.s32.totalorder %s102, 0
      %s105 = sadd.s32 %s104, 1
      %s106 = scalar_select %p103, %s104, %s105
      %p109 = pneg %p103
      %p110 = scmp.eq.s32.totalorder %s16, 1
      %p111 = por %p109, %p110
      %p112 = scmp.ne.s32.totalorder %s104, %s107
      %p113 = scmp.eq.s32.totalorder %s16, 0
      %p114 = por %p112, %p113
      %p115 = scmp.ne.s32.totalorder %s104, %s107
      %p116 = scmp.eq.s32.totalorder %s21, 1
      %p117 = por %p115, %p116
      %p118 = scmp.ne.s32.totalorder %s107, %s108
      %p119 = scmp.eq.s32.totalorder %s21, 0
      %p120 = por %p118, %p119
      %p121 = scmp.ne.s32.totalorder %s107, %s108
      %p122 = scmp.eq.s32.totalorder %s22, 1
      %p123 = por %p121, %p122
      %p125 = scmp.ne.s32.totalorder %s108, %s124
      %p126 = scmp.eq.s32.totalorder %s22, 0
      %p127 = por %p125, %p126
      %s129 = sadd.s32 %s128, 1
      %p132 = scmp.eq.s32.totalorder %s16, 1
      %p133 = scmp.ne.s32.totalorder %s128, %s130
      %p134 = scmp.eq.s32.totalorder %s16, 0
      %p135 = por %p133, %p134
      %p136 = scmp.ne.s32.totalorder %s128, %s130
      %p137 = scmp.eq.s32.totalorder %s21, 1
      %p138 = por %p136, %p137
      %p139 = scmp.ne.s32.totalorder %s130, %s131
      %p140 = scmp.eq.s32.totalorder %s21, 0
      %p141 = por %p139, %p140
      %p142 = scmp.ne.s32.totalorder %s130, %s131
      %p143 = scmp.eq.s32.totalorder %s22, 1
      %p144 = por %p142, %p143
      %p146 = scmp.ne.s32.totalorder %s131, %s145
      %p147 = scmp.eq.s32.totalorder %s22, 0
      %p148 = por %p146, %p147
      %s150 = sadd.s32 %s149, 1
      %p153 = scmp.eq.s32.totalorder %s16, 1
      %p154 = scmp.ne.s32.totalorder %s149, %s151
      %p155 = scmp.eq.s32.totalorder %s16, 0
      %p156 = por %p154, %p155
      %p157 = scmp.ne.s32.totalorder %s149, %s151
      %p158 = scmp.eq.s32.totalorder %s21, 1
      %p159 = por %p157, %p158
      %p160 = scmp.ne.s32.totalorder %s151, %s152
      %p161 = scmp.eq.s32.totalorder %s21, 0
      %p162 = por %p160, %p161
      %p163 = scmp.ne.s32.totalorder %s151, %s152
      %p164 = scmp.eq.s32.totalorder %s22, 1
      %p165 = por %p163, %p164
      %p167 = scmp.ne.s32.totalorder %s152, %s166
      %p168 = scmp.eq.s32.totalorder %s22, 0
      %p169 = por %p167, %p168
      %s171 = sadd.s32 %s170, 1
      %p174 = scmp.eq.s32.totalorder %s16, 1
      %p175 = scmp.ne.s32.totalorder %s170, %s172
      %p176 = scmp.eq.s32.totalorder %s16, 0
      %p177 = por %p175, %p176
      %p178 = scmp.ne.s32.totalorder %s170, %s172
      %p179 = scmp.eq.s32.totalorder %s21, 1
      %p180 = por %p178, %p179
      %p181 = scmp.ne.s32.totalorder %s172, %s173
      %p182 = scmp.eq.s32.totalorder %s21, 0
      %p183 = por %p181, %p182
      %p184 = scmp.ne.s32.totalorder %s172, %s173
      %p185 = scmp.eq.s32.totalorder %s22, 1
      %p186 = por %p184, %p185
      %p188 = scmp.ne.s32.totalorder %s173, %s187
      %p189 = scmp.eq.s32.totalorder %s22, 0
      %p190 = por %p188, %p189
      %s191 = ssub.s32 %s16, %s23
      %p192 = scmp.eq.s32.totalorder %s191, 0
      %s194 = sadd.s32 %s193, 1
      %s195 = scalar_select %p192, %s193, %s194
      %p198 = pneg %p192
      %p199 = scmp.eq.s32.totalorder %s16, 1
      %p200 = por %p198, %p199
      %p201 = scmp.ne.s32.totalorder %s193, %s196
      %p202 = scmp.eq.s32.totalorder %s16, 0
      %p203 = por %p201, %p202
      %p204 = scmp.ne.s32.totalorder %s193, %s196
      %p205 = scmp.eq.s32.totalorder %s21, 1
      %p206 = por %p204, %p205
      %p207 = scmp.ne.s32.totalorder %s196, %s197
      %p208 = scmp.eq.s32.totalorder %s21, 0
      %p209 = por %p207, %p208
      %p210 = scmp.ne.s32.totalorder %s196, %s197
      %p211 = scmp.eq.s32.totalorder %s22, 1
      %p212 = por %p210, %p211
      %p214 = scmp.ne.s32.totalorder %s197, %s213
      %p215 = scmp.eq.s32.totalorder %s22, 0
      %p216 = por %p214, %p215
      %p217 = scmp.le.s32.totalorder 1, %s16
      %p218 = scmp.lt.s32.totalorder %s16, 3
      %p219 = pnand %p217, %p218
      %p220 = pneg %p219
      // Predicated region
      $region9: #{tpu_custom_call.1} parent=5 // pred_check
        _
      $region10: #{tpu_custom_call.1} parent=5 // pred_check_branch
        %222 = sbr.rel (%p219) target = $region12
      $region11: #{tpu_custom_call.1} parent=5 // pred_region
        %s223 = ssub.s32 %s16, 1
        // Predicated region
        $region13: #{tpu_custom_call.1} parent=11 // pred_check
          %p224 = pneg %p141
        $region14: #{tpu_custom_call.1} parent=11 // pred_check_branch
          %226 = sbr.rel (%p224) target = $region16
        $region15: #{tpu_custom_call.1} parent=11 // pred_region
          _
        $region16: #{tpu_custom_call.1} parent=11 // pred_fallthru
          _
        // Predicated region
        $region17: #{tpu_custom_call.1} parent=11 // pred_check
          %p227 = pneg %p162
        $region18: #{tpu_custom_call.1} parent=11 // pred_check_branch
          %229 = sbr.rel (%p227) target = $region20
        $region19: #{tpu_custom_call.1} parent=11 // pred_region
          _
        $region20: #{tpu_custom_call.1} parent=11 // pred_fallthru
          _
        // Predicated region
        $region21: #{tpu_custom_call.1} parent=11 // pred_check
          %p230 = pneg %p183
        $region22: #{tpu_custom_call.1} parent=11 // pred_check_branch
          %232 = sbr.rel (%p230) target = $region24
        $region23: #{tpu_custom_call.1} parent=11 // pred_region
          _
        $region24: #{tpu_custom_call.1} parent=11 // pred_fallthru
          _
      $region12: #{tpu_custom_call.1} parent=5 // pred_fallthru
        _
      %p233 = scmp.lt.s32.totalorder %s16, 2
      // Predicated region
      $region25: #{tpu_custom_call.1} parent=5 // pred_check
        %p234 = pneg %p233
      $region26: #{tpu_custom_call.1} parent=5 // pred_check_branch
        %236 = sbr.rel (%p234) target = $region28
      $region27: #{tpu_custom_call.1} parent=5 // pred_region
        // Predicated region
        $region29: #{tpu_custom_call.1} parent=27 // pred_check
          %p237 = pneg %p36
        $region30: #{tpu_custom_call.1} parent=27 // pred_check_branch
          %239 = sbr.rel (%p237) target = $region32
        $region31: #{tpu_custom_call.1} parent=27 // pred_region
          %p240 = scmp.lt.s32.totalorder %s16, 1
          %s241 = scalar_select %p240, %s16, 1
          %s242 = smul.addr %s241, 4
          %s243 = smul.addr %s242, 4
          %s244 = scalar_lea.vmem %s0, %s243
        $region32: #{tpu_custom_call.1} parent=27 // pred_fallthru
          _
        // Predicated region
        $region33: #{tpu_custom_call.1} parent=27 // pred_check
          %p245 = pneg %p62
        $region34: #{tpu_custom_call.1} parent=27 // pred_check_branch
          %247 = sbr.rel (%p245) target = $region36
        $region35: #{tpu_custom_call.1} parent=27 // pred_region
          %p248 = scmp.lt.s32.totalorder %s16, 1
          %s249 = scalar_select %p248, %s16, 1
          %s250 = smul.addr %s249, 4
          %s251 = smul.addr %s250, 4
          %s252 = scalar_lea.vmem %s1, %s251
        $region36: #{tpu_custom_call.1} parent=27 // pred_fallthru
          _
        // Predicated region
        $region37: #{tpu_custom_call.1} parent=27 // pred_check
          %p253 = pneg %p88
        $region38: #{tpu_custom_call.1} parent=27 // pred_check_branch
          %255 = sbr.rel (%p253) target = $region40
        $region39: #{tpu_custom_call.1} parent=27 // pred_region
          %p256 = scmp.lt.s32.totalorder %s16, 1
          %s257 = scalar_select %p256, %s16, 1
          %s258 = scalar_lea.vmem %s2, %s257
        $region40: #{tpu_custom_call.1} parent=27 // pred_fallthru
          _
        // Predicated region
        $region41: #{tpu_custom_call.1} parent=27 // pred_check
          %p259 = pneg %p114
        $region42: #{tpu_custom_call.1} parent=27 // pred_check_branch
          %261 = sbr.rel (%p259) target = $region44
        $region43: #{tpu_custom_call.1} parent=27 // pred_region
          %p262 = scmp.lt.s32.totalorder %s16, 1
          %s263 = scalar_select %p262, %s16, 1
          %s264 = scalar_lea.vmem %s3, %s263
        $region44: #{tpu_custom_call.1} parent=27 // pred_fallthru
          _
      $region28: #{tpu_custom_call.1} parent=5 // pred_fallthru
        _
      %p265 = scmp.le.s32.totalorder 1, %s16
      %p266 = scmp.lt.s32.totalorder %s16, 3
      %p267 = pnand %p265, %p266
      %p268 = pneg %p267
      // Predicated region
      $region45: #{tpu_custom_call.1} parent=5 // pred_check
        _
      $region46: #{tpu_custom_call.1} parent=5 // pred_check_branch
        %270 = sbr.rel (%p267) target = $region48
      $region47: #{tpu_custom_call.1} parent=5 // pred_region
        %s271 = ssub.s32 %s16, 1
        %p272 = scmp.lt.s32.totalorder %s21, 1
        %s273 = scalar_select %p272, %s21, 1
        %s274 = smul.addr %s273, 4
        %s275 = smul.addr %s274, 4
        %s276 = scalar_lea.vmem %s0, %s275
        %p277 = pneg %p42
        %p278 = pneg %p39
        %p279 = scmp.lt.s32.totalorder %s21, 1
        %s280 = scalar_select %p279, %s21, 1
        %s281 = smul.addr %s280, 4
        %s282 = smul.addr %s281, 4
        %s283 = scalar_lea.vmem %s1, %s282
        %p284 = pneg %p68
        %p285 = pneg %p65
        %p286 = scmp.lt.s32.totalorder %s21, 1
        %s287 = scalar_select %p286, %s21, 1
        %s288 = scalar_lea.vmem %s2, %s287
        %p289 = pneg %p94
        %p290 = pneg %p91
        %p291 = scmp.lt.s32.totalorder %s21, 1
        %s292 = scalar_select %p291, %s21, 1
        %s293 = scalar_lea.vmem %s3, %s292
        %p294 = pneg %p120
        %p295 = pneg %p117
        %p296 = pneg %p141
        %p297 = pneg %p138
        %p298 = pneg %p162
        %p299 = pneg %p159
        %p300 = pneg %p183
        %p301 = pneg %p180
        %p302 = pneg %p209
        %p303 = pneg %p206
        %s304 = sand.u32 %s196, 1
        %s305 = scalar_lea.sflag [#allocation3], %s304
        %s306 = sand.u32 %s196, 1
        %s307 = smul.addr %s306, 64
        %s308 = scalar_lea.vmem [#allocation2], %s307
        %p309 = scmp.lt.s32.totalorder %s21, 1
        %s310 = scalar_select %p309, %s21, 1
        %s311 = smul.addr %s310, 4
        %s312 = smul.addr %s311, 4
        %s313 = scalar_lea.vmem %s0, %s312
        %p314 = scmp.lt.s32.totalorder %s21, 1
        %s315 = scalar_select %p314, %s21, 1
        %s316 = smul.addr %s315, 4
        %s317 = smul.addr %s316, 4
        %s318 = scalar_lea.vmem %s1, %s317
        %p319 = scmp.lt.s32.totalorder %s21, 1
        %s320 = scalar_select %p319, %s21, 1
        %s321 = scalar_lea.vmem %s2, %s320
        %p322 = scmp.lt.s32.totalorder %s21, 1
        %s323 = scalar_select %p322, %s21, 1
        %s324 = scalar_lea.vmem %s3, %s323
        %v326 = vld [vmem:[%s4] sm:$0xff]
        %v327 = vld [vmem:[%s4 + $0x8] sm:$0xff]
        %v328 = vld [vmem:[%s4 + $0x10] sm:$0xff]
        %v329 = vld [vmem:[%s4 + $0x18] sm:$0xff]
        %v330 = vld [vmem:[%s5] sm:$0xff]
        %v331 = vld [vmem:[%s5 + $0x8] sm:$0xff]
        %v332 = vld [vmem:[%s5 + $0x10] sm:$0xff]
        %v333 = vld [vmem:[%s5 + $0x18] sm:$0xff]
        %v334 = vld [vmem:[%s6] sm:$0x1]
        %v335 = vld [vmem:[%s313] sm:$0xf]
        %v336 = vld [vmem:[%s313 + $0x4] sm:$0xf]
        %v337 = vld [vmem:[%s313 + $0x8] sm:$0xf]
        %v338 = vld [vmem:[%s313 + $0xc] sm:$0xf]
        %v339 = vld [vmem:[%s318] sm:$0xf]
        %v340 = vld [vmem:[%s318 + $0x4] sm:$0xf]
        %v341 = vld [vmem:[%s318 + $0x8] sm:$0xf]
        %v342 = vld [vmem:[%s318 + $0xc] sm:$0xf]
        %v343 = vld [vmem:[%s321] sm:$0x1]
        %v344 = vld [vmem:[%s324] sm:$0x1]
        %v345 = vunpack.c.l.bf16 %v339
        %v346 = vunpack.c.l.bf16 %v340
        %v347 = vunpack.c.l.bf16 %v341
        %v348 = vunpack.c.l.bf16 %v342
        %350 = vset.pattern.permute.xlu0 0
        %351 = vperm.xlu0 %350, %v330
        %v352 = vpop.permute.xlu0 %351
        %355 = vset.pattern.permute.xlu0 0
        %356 = vperm.xlu0 %355, %v331
        %v357 = vpop.permute.xlu0 %356
        %360 = vset.pattern.permute.xlu0 0
        %361 = vperm.xlu0 %360, %v332
        %v362 = vpop.permute.xlu0 %361
        %365 = vset.pattern.permute.xlu0 0
        %366 = vperm.xlu0 %365, %v333
        %v367 = vpop.permute.xlu0 %366
        %v369 = vmul.f32 %v345, %v352
        %v370 = vmul.f32 %v346, %v357
        %v371 = vmul.f32 %v347, %v362
        %v372 = vmul.f32 %v348, %v367
        %374 = vset.pattern.permute.xlu0 0
        %375 = vperm.xlu0 %374, %v326
        %v376 = vpop.permute.xlu0 %375
        %379 = vset.pattern.permute.xlu0 0
        %380 = vperm.xlu0 %379, %v327
        %v381 = vpop.permute.xlu0 %380
        %384 = vset.pattern.permute.xlu0 0
        %385 = vperm.xlu0 %384, %v328
        %v386 = vpop.permute.xlu0 %385
        %389 = vset.pattern.permute.xlu0 0
        %390 = vperm.xlu0 %389, %v329
        %v391 = vpop.permute.xlu0 %390
        %v393 = vadd.f32 %v369, %v376
        %v394 = vadd.f32 %v370, %v381
        %v395 = vadd.f32 %v371, %v386
        %v396 = vadd.f32 %v372, %v391
        %v397 = vpack.c.bf16 %v394, %v393
        %v398 = vpack.c.bf16 %v396, %v395
        %v403 = vunpack.c.l.b16 %v339
        %v404 = vunpack.c.l.b16 %v340
        %v405 = vunpack.c.l.b16 %v341
        %v406 = vunpack.c.l.b16 %v342
        %v407 = vpack.c.b16 %v404, %v403
        %v408 = vpack.c.b16 %v406, %v405
        %vm411 = vcmask 261120
        %v413 = vsel %vm411, %v334, 0
        %415 = vmatprep.subr.bf16.mxu0 0
        %416 = vmatpush1.bf16.msra.mxu0 0
        %417 = vmatprep.subr.bf16.mxu0 0
        %418 = vmatpush1.bf16.msra.mxu0 0
        %419 = vmatprep.subr.bf16.mxu0 0
        %420 = vmatpush1.bf16.msra.mxu0 0
        %421 = vmatprep.subr.bf16.mxu0 0
        %422 = vmatpush1.bf16.msra.mxu0 0
        %423 = vmatprep.subr.bf16.mxu0 0
        %424 = vmatpush1.bf16.msra.mxu0 0
        %425 = vmatprep.subr.bf16.mxu0 0
        %426 = vmatpush1.bf16.msra.mxu0 0
        %427 = vmatprep.subr.bf16.mxu0 0
        %428 = vmatpush1.bf16.msra.mxu0 %v408
        %429 = vmatprep.subr.bf16.mxu0 0
        %430 = vmatpush1.bf16.msra.mxu0 %v407
        %431 = vmatprep.subr.bf16.mxu0 0
        %432 = vmatpush2.bf16.msra.mxu0 0
        %433 = vmatprep.subr.bf16.mxu0 0
        %434 = vmatpush2.bf16.msra.mxu0 0
        %435 = vmatprep.subr.bf16.mxu0 0
        %436 = vmatpush2.bf16.msra.mxu0 0
        %437 = vmatprep.subr.bf16.mxu0 0
        %438 = vmatpush2.bf16.msra.mxu0 0
        %439 = vmatprep.subr.bf16.mxu0 0
        %440 = vmatpush2.bf16.msra.mxu0 0
        %441 = vmatprep.subr.bf16.mxu0 0
        %442 = vmatpush2.bf16.msra.mxu0 0
        %443 = vmatprep.subr.bf16.mxu0 0
        %444 = vmatpush2.bf16.msra.mxu0 0
        %445 = vmatprep.subr.bf16.mxu0 0
        %446 = vmatpush2.bf16.msra.mxu0 0
        %447 = vmatprep.mubr.bf16.mxu0 0
        %448 = vmatmul.mubr.bf16.gmra.mxu0 %v413
        %v449 = vpop.f32.mrf.mxu0
        %v450 = vadd.f32 0.0, %v449
        %v451 = vpop.f32.mrf.mxu0
        %v452 = vpop.f32.mrf.mxu0
        %v453 = vpop.f32.mrf.mxu0
        %454 = vdwg.mxu0
        %v455 = vlaneseq
        %v456 = vshrl.u32 %v455, 7
        %v457 = vsub.s32 0, %v456
        %v458 = vrot.slane %v450, %v457
        %v463 = vunpack.c.l.b16 %v335
        %v464 = vunpack.c.l.b16 %v336
        %v465 = vunpack.c.l.b16 %v337
        %v466 = vunpack.c.l.b16 %v338
        %v467 = vpack.c.b16 %v464, %v463
        %v468 = vpack.c.b16 %v466, %v465
        %471 = vxpose.xlu0.c.b16.start [1/8] %v467, 128
        %472 = vxpose.xlu0.c.b16.cont [2/8] %v468, 128
        %473 = vxpose.xlu0.c.b16.cont [3/8] 0, 128
        %474 = vxpose.xlu0.c.b16.cont [4/8] 0, 128
        %475 = vxpose.xlu0.c.b16.cont [5/8] 0, 128
        %476 = vxpose.xlu0.c.b16.cont [6/8] 0, 128
        %477 = vxpose.xlu0.c.b16.cont [7/8] 0, 128
        %478 = vxpose.xlu0.c.b16.end [8/8] 0, 128
        %v479 = vpop.trf.xlu0
        %v480 = vpop.trf.xlu0
        %v481 = vpop.trf.xlu0
        %v482 = vpop.trf.xlu0
        %v483 = vpop.trf.xlu0
        %v484 = vpop.trf.xlu0
        %v485 = vpop.trf.xlu0
        %v486 = vpop.trf.xlu0
        %v488 = vsel %vm411, %v479, 0
        %v491 = vsel %vm411, %v480, 0
        %v494 = vsel %vm411, %v481, 0
        %v497 = vsel %vm411, %v482, 0
        %v500 = vsel %vm411, %v483, 0
        %v503 = vsel %vm411, %v484, 0
        %v506 = vsel %vm411, %v485, 0
        %v509 = vsel %vm411, %v486, 0
        %511 = vmatprep.subr.bf16.mxu0 0
        %512 = vmatpush1.bf16.msra.mxu0 0
        %513 = vmatprep.subr.bf16.mxu0 0
        %514 = vmatpush1.bf16.msra.mxu0 0
        %515 = vmatprep.subr.bf16.mxu0 0
        %516 = vmatpush1.bf16.msra.mxu0 0
        %517 = vmatprep.subr.bf16.mxu0 0
        %518 = vmatpush1.bf16.msra.mxu0 0
        %519 = vmatprep.subr.bf16.mxu0 0
        %520 = vmatpush1.bf16.msra.mxu0 0
        %521 = vmatprep.subr.bf16.mxu0 0
        %522 = vmatpush1.bf16.msra.mxu0 0
        %523 = vmatprep.subr.bf16.mxu0 0
        %524 = vmatpush1.bf16.msra.mxu0 %v398
        %525 = vmatprep.subr.bf16.mxu0 0
        %526 = vmatpush1.bf16.msra.mxu0 %v397
        %527 = vmatprep.subr.bf16.mxu0 0
        %528 = vmatpush2.bf16.msra.mxu0 0
        %529 = vmatprep.subr.bf16.mxu0 0
        %530 = vmatpush2.bf16.msra.mxu0 0
        %531 = vmatprep.subr.bf16.mxu0 0
        %532 = vmatpush2.bf16.msra.mxu0 0
        %533 = vmatprep.subr.bf16.mxu0 0
        %534 = vmatpush2.bf16.msra.mxu0 0
        %535 = vmatprep.subr.bf16.mxu0 0
        %536 = vmatpush2.bf16.msra.mxu0 0
        %537 = vmatprep.subr.bf16.mxu0 0
        %538 = vmatpush2.bf16.msra.mxu0 0
        %539 = vmatprep.subr.bf16.mxu0 0
        %540 = vmatpush2.bf16.msra.mxu0 0
        %541 = vmatprep.subr.bf16.mxu0 0
        %542 = vmatpush2.bf16.msra.mxu0 0
        %543 = vmatprep.mubr.bf16.mxu0 0
        %544 = vmatmul.mubr.bf16.gmra.mxu0 %v488
        %v545 = vpop.f32.mrf.mxu0
        %v546 = vadd.f32 %v458, %v545
        %v547 = vpop.f32.mrf.mxu0
        %v548 = vpop.f32.mrf.mxu0
        %v549 = vadd.f32 %v458, %v548
        %v550 = vpop.f32.mrf.mxu0
        %551 = vmatprep.mubr.bf16.mxu0 0
        %552 = vmatmul.mubr.bf16.gmra.mxu0 %v491
        %v553 = vpop.f32.mrf.mxu0
        %v554 = vadd.f32 %v458, %v553
        %v555 = vpop.f32.mrf.mxu0
        %v556 = vpop.f32.mrf.mxu0
        %v557 = vadd.f32 %v458, %v556
        %v558 = vpop.f32.mrf.mxu0
        %559 = vmatprep.mubr.bf16.mxu0 0
        %560 = vmatmul.mubr.bf16.gmra.mxu0 %v494
        %v561 = vpop.f32.mrf.mxu0
        %v562 = vadd.f32 %v458, %v561
        %v563 = vpop.f32.mrf.mxu0
        %v564 = vpop.f32.mrf.mxu0
        %v565 = vadd.f32 %v458, %v564
        %v566 = vpop.f32.mrf.mxu0
        %567 = vmatprep.mubr.bf16.mxu0 0
        %568 = vmatmul.mubr.bf16.gmra.mxu0 %v497
        %v569 = vpop.f32.mrf.mxu0
        %v570 = vadd.f32 %v458, %v569
        %v571 = vpop.f32.mrf.mxu0
        %v572 = vpop.f32.mrf.mxu0
        %v573 = vadd.f32 %v458, %v572
        %v574 = vpop.f32.mrf.mxu0
        %575 = vmatprep.mubr.bf16.mxu0 0
        %576 = vmatmul.mubr.bf16.gmra.mxu0 %v500
        %v577 = vpop.f32.mrf.mxu0
        %v578 = vadd.f32 %v458, %v577
        %v579 = vpop.f32.mrf.mxu0
        %v580 = vpop.f32.mrf.mxu0
        %v581 = vadd.f32 %v458, %v580
        %v582 = vpop.f32.mrf.mxu0
        %583 = vmatprep.mubr.bf16.mxu0 0
        %584 = vmatmul.mubr.bf16.gmra.mxu0 %v503
        %v585 = vpop.f32.mrf.mxu0
        %v586 = vadd.f32 %v458, %v585
        %v587 = vpop.f32.mrf.mxu0
        %v588 = vpop.f32.mrf.mxu0
        %v589 = vadd.f32 %v458, %v588
        %v590 = vpop.f32.mrf.mxu0
        %591 = vmatprep.mubr.bf16.mxu0 0
        %592 = vmatmul.mubr.bf16.gmra.mxu0 %v506
        %v593 = vpop.f32.mrf.mxu0
        %v594 = vadd.f32 %v458, %v593
        %v595 = vpop.f32.mrf.mxu0
        %v596 = vpop.f32.mrf.mxu0
        %v597 = vadd.f32 %v458, %v596
        %v598 = vpop.f32.mrf.mxu0
        %599 = vmatprep.mubr.bf16.mxu0 0
        %600 = vmatmul.mubr.bf16.gmra.mxu0 %v509
        %v601 = vpop.f32.mrf.mxu0
        %v602 = vadd.f32 %v458, %v601
        %v603 = vpop.f32.mrf.mxu0
        %v604 = vpop.f32.mrf.mxu0
        %v605 = vadd.f32 %v458, %v604
        %v606 = vpop.f32.mrf.mxu0
        %607 = vdwg.mxu0
        %v609 = vlaneseq
        %v610 = vshrl.u32 %v609, 7
        %v611 = vsub.s32 0, %v610
        %v612 = vrot.slane %v344, %v611
        %v614 = vadd.f32 %v546, %v612
        %v615 = vadd.f32 %v549, %v612
        %v616 = vadd.f32 %v554, %v612
        %v617 = vadd.f32 %v557, %v612
        %v618 = vadd.f32 %v562, %v612
        %v619 = vadd.f32 %v565, %v612
        %v620 = vadd.f32 %v570, %v612
        %v621 = vadd.f32 %v573, %v612
        %v622 = vadd.f32 %v578, %v612
        %v623 = vadd.f32 %v581, %v612
        %v624 = vadd.f32 %v586, %v612
        %v625 = vadd.f32 %v589, %v612
        %v626 = vadd.f32 %v594, %v612
        %v627 = vadd.f32 %v597, %v612
        %v628 = vadd.f32 %v602, %v612
        %v629 = vadd.f32 %v605, %v612
        %630 = vmax.xlane.f32.xlu0 %v614
        %v631 = vpop.xlane.xlu0 %630
        %632 = vmax.xlane.f32.xlu0 %v615
        %v633 = vpop.xlane.xlu0 %632
        %634 = vmax.xlane.f32.xlu0 %v616
        %v635 = vpop.xlane.xlu0 %634
        %636 = vmax.xlane.f32.xlu0 %v617
        %v637 = vpop.xlane.xlu0 %636
        %638 = vmax.xlane.f32.xlu0 %v618
        %v639 = vpop.xlane.xlu0 %638
        %640 = vmax.xlane.f32.xlu0 %v619
        %v641 = vpop.xlane.xlu0 %640
        %642 = vmax.xlane.f32.xlu0 %v620
        %v643 = vpop.xlane.xlu0 %642
        %644 = vmax.xlane.f32.xlu0 %v621
        %v645 = vpop.xlane.xlu0 %644
        %646 = vmax.xlane.f32.xlu0 %v622
        %v647 = vpop.xlane.xlu0 %646
        %648 = vmax.xlane.f32.xlu0 %v623
        %v649 = vpop.xlane.xlu0 %648
        %650 = vmax.xlane.f32.xlu0 %v624
        %v651 = vpop.xlane.xlu0 %650
        %652 = vmax.xlane.f32.xlu0 %v625
        %v653 = vpop.xlane.xlu0 %652
        %654 = vmax.xlane.f32.xlu0 %v626
        %v655 = vpop.xlane.xlu0 %654
        %656 = vmax.xlane.f32.xlu0 %v627
        %v657 = vpop.xlane.xlu0 %656
        %658 = vmax.xlane.f32.xlu0 %v628
        %v659 = vpop.xlane.xlu0 %658
        %660 = vmax.xlane.f32.xlu0 %v629
        %v661 = vpop.xlane.xlu0 %660
        %v662 = vsub.f32 %v614, %v631
        %v663 = vsub.f32 %v615, %v633
        %v664 = vsub.f32 %v616, %v635
        %v665 = vsub.f32 %v617, %v637
        %v666 = vsub.f32 %v618, %v639
        %v667 = vsub.f32 %v619, %v641
        %v668 = vsub.f32 %v620, %v643
        %v669 = vsub.f32 %v621, %v645
        %v670 = vsub.f32 %v622, %v647
        %v671 = vsub.f32 %v623, %v649
        %v672 = vsub.f32 %v624, %v651
        %v673 = vsub.f32 %v625, %v653
        %v674 = vsub.f32 %v626, %v655
        %v675 = vsub.f32 %v627, %v657
        %v676 = vsub.f32 %v628, %v659
        %v677 = vsub.f32 %v629, %v661
        %v678 = vmul.f32 %v662, 1.442695
        %v679 = vpow.pop %v678
        %v680 = vmul.f32 %v663, 1.442695
        %v681 = vpow.pop %v680
        %v682 = vmul.f32 %v664, 1.442695
        %v683 = vpow.pop %v682
        %v684 = vmul.f32 %v665, 1.442695
        %v685 = vpow.pop %v684
        %v686 = vmul.f32 %v666, 1.442695
        %v687 = vpow.pop %v686
        %v688 = vmul.f32 %v667, 1.442695
        %v689 = vpow.pop %v688
        %v690 = vmul.f32 %v668, 1.442695
        %v691 = vpow.pop %v690
        %v692 = vmul.f32 %v669, 1.442695
        %v693 = vpow.pop %v692
        %v694 = vmul.f32 %v670, 1.442695
        %v695 = vpow.pop %v694
        %v696 = vmul.f32 %v671, 1.442695
        %v697 = vpow.pop %v696
        %v698 = vmul.f32 %v672, 1.442695
        %v699 = vpow.pop %v698
        %v700 = vmul.f32 %v673, 1.442695
        %v701 = vpow.pop %v700
        %v702 = vmul.f32 %v674, 1.442695
        %v703 = vpow.pop %v702
        %v704 = vmul.f32 %v675, 1.442695
        %v705 = vpow.pop %v704
        %v706 = vmul.f32 %v676, 1.442695
        %v707 = vpow.pop %v706
        %v708 = vmul.f32 %v677, 1.442695
        %v709 = vpow.pop %v708
        %710 = vadd.xlane.f32.xlu0 %v679
        %v711 = vpop.xlane.xlu0 %710
        %712 = vadd.xlane.f32.xlu0 %v681
        %v713 = vpop.xlane.xlu0 %712
        %714 = vadd.xlane.f32.xlu0 %v683
        %v715 = vpop.xlane.xlu0 %714
        %716 = vadd.xlane.f32.xlu0 %v685
        %v717 = vpop.xlane.xlu0 %716
        %718 = vadd.xlane.f32.xlu0 %v687
        %v719 = vpop.xlane.xlu0 %718
        %720 = vadd.xlane.f32.xlu0 %v689
        %v721 = vpop.xlane.xlu0 %720
        %722 = vadd.xlane.f32.xlu0 %v691
        %v723 = vpop.xlane.xlu0 %722
        %724 = vadd.xlane.f32.xlu0 %v693
        %v725 = vpop.xlane.xlu0 %724
        %726 = vadd.xlane.f32.xlu0 %v695
        %v727 = vpop.xlane.xlu0 %726
        %728 = vadd.xlane.f32.xlu0 %v697
        %v729 = vpop.xlane.xlu0 %728
        %730 = vadd.xlane.f32.xlu0 %v699
        %v731 = vpop.xlane.xlu0 %730
        %732 = vadd.xlane.f32.xlu0 %v701
        %v733 = vpop.xlane.xlu0 %732
        %734 = vadd.xlane.f32.xlu0 %v703
        %v735 = vpop.xlane.xlu0 %734
        %736 = vadd.xlane.f32.xlu0 %v705
        %v737 = vpop.xlane.xlu0 %736
        %738 = vadd.xlane.f32.xlu0 %v707
        %v739 = vpop.xlane.xlu0 %738
        %740 = vadd.xlane.f32.xlu0 %v709
        %v741 = vpop.xlane.xlu0 %740
        %v742 = vrcp.pop %v711
        %v743 = vrcp.pop %v713
        %v744 = vrcp.pop %v715
        %v745 = vrcp.pop %v717
        %v746 = vrcp.pop %v719
        %v747 = vrcp.pop %v721
        %v748 = vrcp.pop %v723
        %v749 = vrcp.pop %v725
        %v750 = vrcp.pop %v727
        %v751 = vrcp.pop %v729
        %v752 = vrcp.pop %v731
        %v753 = vrcp.pop %v733
        %v754 = vrcp.pop %v735
        %v755 = vrcp.pop %v737
        %v756 = vrcp.pop %v739
        %v757 = vrcp.pop %v741
        %v758 = vmul.f32 %v679, %v742
        %v759 = vmul.f32 %v681, %v743
        %v760 = vmul.f32 %v683, %v744
        %v761 = vmul.f32 %v685, %v745
        %v762 = vmul.f32 %v687, %v746
        %v763 = vmul.f32 %v689, %v747
        %v764 = vmul.f32 %v691, %v748
        %v765 = vmul.f32 %v693, %v749
        %v766 = vmul.f32 %v695, %v750
        %v767 = vmul.f32 %v697, %v751
        %v768 = vmul.f32 %v699, %v752
        %v769 = vmul.f32 %v701, %v753
        %v770 = vmul.f32 %v703, %v754
        %v771 = vmul.f32 %v705, %v755
        %v772 = vmul.f32 %v707, %v756
        %v773 = vmul.f32 %v709, %v757
        %v775 = vlaneseq
        %v776 = vshrl.u32 %v775, 7
        %v777 = vsub.s32 0, %v776
        %v778 = vrot.slane %v343, %v777
        %780 = vxpose.xlu0.c.b16.start [1/8] %v397, 128
        %781 = vxpose.xlu0.c.b16.cont [2/8] %v398, 128
        %782 = vxpose.xlu0.c.b16.cont [3/8] 0, 128
        %783 = vxpose.xlu0.c.b16.cont [4/8] 0, 128
        %784 = vxpose.xlu0.c.b16.cont [5/8] 0, 128
        %785 = vxpose.xlu0.c.b16.cont [6/8] 0, 128
        %786 = vxpose.xlu0.c.b16.cont [7/8] 0, 128
        %787 = vxpose.xlu0.c.b16.end [8/8] 0, 128
        %v788 = vpop.trf.xlu0
        %v789 = vpop.trf.xlu0
        %v790 = vpop.trf.xlu0
        %v791 = vpop.trf.xlu0
        %v792 = vpop.trf.xlu0
        %v793 = vpop.trf.xlu0
        %v794 = vpop.trf.xlu0
        %v795 = vpop.trf.xlu0
        %v797 = vsel %vm411, %v788, 0
        %v800 = vsel %vm411, %v789, 0
        %v803 = vsel %vm411, %v790, 0
        %v806 = vsel %vm411, %v791, 0
        %v809 = vsel %vm411, %v792, 0
        %v812 = vsel %vm411, %v793, 0
        %v815 = vsel %vm411, %v794, 0
        %v818 = vsel %vm411, %v795, 0
        %820 = vmatprep.subr.bf16.mxu0 0
        %821 = vmatpush1.bf16.msra.mxu0 0
        %822 = vmatprep.subr.bf16.mxu0 0
        %823 = vmatpush1.bf16.msra.mxu0 0
        %824 = vmatprep.subr.bf16.mxu0 0
        %825 = vmatpush1.bf16.msra.mxu0 0
        %826 = vmatprep.subr.bf16.mxu0 0
        %827 = vmatpush1.bf16.msra.mxu0 0
        %828 = vmatprep.subr.bf16.mxu0 0
        %829 = vmatpush1.bf16.msra.mxu0 0
        %830 = vmatprep.subr.bf16.mxu0 0
        %831 = vmatpush1.bf16.msra.mxu0 0
        %832 = vmatprep.subr.bf16.mxu0 0
        %833 = vmatpush1.bf16.msra.mxu0 %v468
        %834 = vmatprep.subr.bf16.mxu0 0
        %835 = vmatpush1.bf16.msra.mxu0 %v467
        %836 = vmatprep.subr.bf16.mxu0 0
        %837 = vmatpush2.bf16.msra.mxu0 0
        %838 = vmatprep.subr.bf16.mxu0 0
        %839 = vmatpush2.bf16.msra.mxu0 0
        %840 = vmatprep.subr.bf16.mxu0 0
        %841 = vmatpush2.bf16.msra.mxu0 0
        %842 = vmatprep.subr.bf16.mxu0 0
        %843 = vmatpush2.bf16.msra.mxu0 0
        %844 = vmatprep.subr.bf16.mxu0 0
        %845 = vmatpush2.bf16.msra.mxu0 0
        %846 = vmatprep.subr.bf16.mxu0 0
        %847 = vmatpush2.bf16.msra.mxu0 0
        %848 = vmatprep.subr.bf16.mxu0 0
        %849 = vmatpush2.bf16.msra.mxu0 0
        %850 = vmatprep.subr.bf16.mxu0 0
        %851 = vmatpush2.bf16.msra.mxu0 0
        %852 = vmatprep.mubr.bf16.mxu0 0
        %853 = vmatmul.mubr.bf16.gmra.mxu0 %v797
        %v854 = vpop.f32.mrf.mxu0
        %v855 = vadd.f32 %v778, %v854
        %v856 = vpop.f32.mrf.mxu0
        %v857 = vpop.f32.mrf.mxu0
        %v858 = vadd.f32 %v778, %v857
        %v859 = vpop.f32.mrf.mxu0
        %860 = vmatprep.mubr.bf16.mxu0 0
        %861 = vmatmul.mubr.bf16.gmra.mxu0 %v800
        %v862 = vpop.f32.mrf.mxu0
        %v863 = vadd.f32 %v778, %v862
        %v864 = vpop.f32.mrf.mxu0
        %v865 = vpop.f32.mrf.mxu0
        %v866 = vadd.f32 %v778, %v865
        %v867 = vpop.f32.mrf.mxu0
        %868 = vmatprep.mubr.bf16.mxu0 0
        %869 = vmatmul.mubr.bf16.gmra.mxu0 %v803
        %v870 = vpop.f32.mrf.mxu0
        %v871 = vadd.f32 %v778, %v870
        %v872 = vpop.f32.mrf.mxu0
        %v873 = vpop.f32.mrf.mxu0
        %v874 = vadd.f32 %v778, %v873
        %v875 = vpop.f32.mrf.mxu0
        %876 = vmatprep.mubr.bf16.mxu0 0
        %877 = vmatmul.mubr.bf16.gmra.mxu0 %v806
        %v878 = vpop.f32.mrf.mxu0
        %v879 = vadd.f32 %v778, %v878
        %v880 = vpop.f32.mrf.mxu0
        %v881 = vpop.f32.mrf.mxu0
        %v882 = vadd.f32 %v778, %v881
        %v883 = vpop.f32.mrf.mxu0
        %884 = vmatprep.mubr.bf16.mxu0 0
        %885 = vmatmul.mubr.bf16.gmra.mxu0 %v809
        %v886 = vpop.f32.mrf.mxu0
        %v887 = vadd.f32 %v778, %v886
        %v888 = vpop.f32.mrf.mxu0
        %v889 = vpop.f32.mrf.mxu0
        %v890 = vadd.f32 %v778, %v889
        %v891 = vpop.f32.mrf.mxu0
        %892 = vmatprep.mubr.bf16.mxu0 0
        %893 = vmatmul.mubr.bf16.gmra.mxu0 %v812
        %v894 = vpop.f32.mrf.mxu0
        %v895 = vadd.f32 %v778, %v894
        %v896 = vpop.f32.mrf.mxu0
        %v897 = vpop.f32.mrf.mxu0
        %v898 = vadd.f32 %v778, %v897
        %v899 = vpop.f32.mrf.mxu0
        %900 = vmatprep.mubr.bf16.mxu0 0
        %901 = vmatmul.mubr.bf16.gmra.mxu0 %v815
        %v902 = vpop.f32.mrf.mxu0
        %v903 = vadd.f32 %v778, %v902
        %v904 = vpop.f32.mrf.mxu0
        %v905 = vpop.f32.mrf.mxu0
        %v906 = vadd.f32 %v778, %v905
        %v907 = vpop.f32.mrf.mxu0
        %908 = vmatprep.mubr.bf16.mxu0 0
        %909 = vmatmul.mubr.bf16.gmra.mxu0 %v818
        %v910 = vpop.f32.mrf.mxu0
        %v911 = vadd.f32 %v778, %v910
        %v912 = vpop.f32.mrf.mxu0
        %v913 = vpop.f32.mrf.mxu0
        %v914 = vadd.f32 %v778, %v913
        %v915 = vpop.f32.mrf.mxu0
        %916 = vdwg.mxu0
        %917 = vmax.xlane.f32.xlu0 %v855
        %v918 = vpop.xlane.xlu0 %917
        %919 = vmax.xlane.f32.xlu0 %v858
        %v920 = vpop.xlane.xlu0 %919
        %921 = vmax.xlane.f32.xlu0 %v863
        %v922 = vpop.xlane.xlu0 %921
        %923 = vmax.xlane.f32.xlu0 %v866
        %v924 = vpop.xlane.xlu0 %923
        %925 = vmax.xlane.f32.xlu0 %v871
        %v926 = vpop.xlane.xlu0 %925
        %927 = vmax.xlane.f32.xlu0 %v874
        %v928 = vpop.xlane.xlu0 %927
        %929 = vmax.xlane.f32.xlu0 %v879
        %v930 = vpop.xlane.xlu0 %929
        %931 = vmax.xlane.f32.xlu0 %v882
        %v932 = vpop.xlane.xlu0 %931
        %933 = vmax.xlane.f32.xlu0 %v887
        %v934 = vpop.xlane.xlu0 %933
        %935 = vmax.xlane.f32.xlu0 %v890
        %v936 = vpop.xlane.xlu0 %935
        %937 = vmax.xlane.f32.xlu0 %v895
        %v938 = vpop.xlane.xlu0 %937
        %939 = vmax.xlane.f32.xlu0 %v898
        %v940 = vpop.xlane.xlu0 %939
        %941 = vmax.xlane.f32.xlu0 %v903
        %v942 = vpop.xlane.xlu0 %941
        %943 = vmax.xlane.f32.xlu0 %v906
        %v944 = vpop.xlane.xlu0 %943
        %945 = vmax.xlane.f32.xlu0 %v911
        %v946 = vpop.xlane.xlu0 %945
        %947 = vmax.xlane.f32.xlu0 %v914
        %v948 = vpop.xlane.xlu0 %947
        %v949 = vsub.f32 %v855, %v918
        %v950 = vsub.f32 %v858, %v920
        %v951 = vsub.f32 %v863, %v922
        %v952 = vsub.f32 %v866, %v924
        %v953 = vsub.f32 %v871, %v926
        %v954 = vsub.f32 %v874, %v928
        %v955 = vsub.f32 %v879, %v930
        %v956 = vsub.f32 %v882, %v932
        %v957 = vsub.f32 %v887, %v934
        %v958 = vsub.f32 %v890, %v936
        %v959 = vsub.f32 %v895, %v938
        %v960 = vsub.f32 %v898, %v940
        %v961 = vsub.f32 %v903, %v942
        %v962 = vsub.f32 %v906, %v944
        %v963 = vsub.f32 %v911, %v946
        %v964 = vsub.f32 %v914, %v948
        %v965 = vmul.f32 %v949, 1.442695
        %v966 = vpow.pop %v965
        %v967 = vmul.f32 %v950, 1.442695
        %v968 = vpow.pop %v967
        %v969 = vmul.f32 %v951, 1.442695
        %v970 = vpow.pop %v969
        %v971 = vmul.f32 %v952, 1.442695
        %v972 = vpow.pop %v971
        %v973 = vmul.f32 %v953, 1.442695
        %v974 = vpow.pop %v973
        %v975 = vmul.f32 %v954, 1.442695
        %v976 = vpow.pop %v975
        %v977 = vmul.f32 %v955, 1.442695
        %v978 = vpow.pop %v977
        %v979 = vmul.f32 %v956, 1.442695
        %v980 = vpow.pop %v979
        %v981 = vmul.f32 %v957, 1.442695
        %v982 = vpow.pop %v981
        %v983 = vmul.f32 %v958, 1.442695
        %v984 = vpow.pop %v983
        %v985 = vmul.f32 %v959, 1.442695
        %v986 = vpow.pop %v985
        %v987 = vmul.f32 %v960, 1.442695
        %v988 = vpow.pop %v987
        %v989 = vmul.f32 %v961, 1.442695
        %v990 = vpow.pop %v989
        %v991 = vmul.f32 %v962, 1.442695
        %v992 = vpow.pop %v991
        %v993 = vmul.f32 %v963, 1.442695
        %v994 = vpow.pop %v993
        %v995 = vmul.f32 %v964, 1.442695
        %v996 = vpow.pop %v995
        %997 = vadd.xlane.f32.xlu0 %v966
        %v998 = vpop.xlane.xlu0 %997
        %999 = vadd.xlane.f32.xlu0 %v968
        %v1000 = vpop.xlane.xlu0 %999
        %1001 = vadd.xlane.f32.xlu0 %v970
        %v1002 = vpop.xlane.xlu0 %1001
        %1003 = vadd.xlane.f32.xlu0 %v972
        %v1004 = vpop.xlane.xlu0 %1003
        %1005 = vadd.xlane.f32.xlu0 %v974
        %v1006 = vpop.xlane.xlu0 %1005
        %1007 = vadd.xlane.f32.xlu0 %v976
        %v1008 = vpop.xlane.xlu0 %1007
        %1009 = vadd.xlane.f32.xlu0 %v978
        %v1010 = vpop.xlane.xlu0 %1009
        %1011 = vadd.xlane.f32.xlu0 %v980
        %v1012 = vpop.xlane.xlu0 %1011
        %1013 = vadd.xlane.f32.xlu0 %v982
        %v1014 = vpop.xlane.xlu0 %1013
        %1015 = vadd.xlane.f32.xlu0 %v984
        %v1016 = vpop.xlane.xlu0 %1015
        %1017 = vadd.xlane.f32.xlu0 %v986
        %v1018 = vpop.xlane.xlu0 %1017
        %1019 = vadd.xlane.f32.xlu0 %v988
        %v1020 = vpop.xlane.xlu0 %1019
        %1021 = vadd.xlane.f32.xlu0 %v990
        %v1022 = vpop.xlane.xlu0 %1021
        %1023 = vadd.xlane.f32.xlu0 %v992
        %v1024 = vpop.xlane.xlu0 %1023
        %1025 = vadd.xlane.f32.xlu0 %v994
        %v1026 = vpop.xlane.xlu0 %1025
        %1027 = vadd.xlane.f32.xlu0 %v996
        %v1028 = vpop.xlane.xlu0 %1027
        %v1029 = vrcp.pop %v998
        %v1030 = vrcp.pop %v1000
        %v1031 = vrcp.pop %v1002
        %v1032 = vrcp.pop %v1004
        %v1033 = vrcp.pop %v1006
        %v1034 = vrcp.pop %v1008
        %v1035 = vrcp.pop %v1010
        %v1036 = vrcp.pop %v1012
        %v1037 = vrcp.pop %v1014
        %v1038 = vrcp.pop %v1016
        %v1039 = vrcp.pop %v1018
        %v1040 = vrcp.pop %v1020
        %v1041 = vrcp.pop %v1022
        %v1042 = vrcp.pop %v1024
        %v1043 = vrcp.pop %v1026
        %v1044 = vrcp.pop %v1028
        %v1045 = vmul.f32 %v966, %v1029
        %v1046 = vmul.f32 %v968, %v1030
        %v1047 = vmul.f32 %v970, %v1031
        %v1048 = vmul.f32 %v972, %v1032
        %v1049 = vmul.f32 %v974, %v1033
        %v1050 = vmul.f32 %v976, %v1034
        %v1051 = vmul.f32 %v978, %v1035
        %v1052 = vmul.f32 %v980, %v1036
        %v1053 = vmul.f32 %v982, %v1037
        %v1054 = vmul.f32 %v984, %v1038
        %v1055 = vmul.f32 %v986, %v1039
        %v1056 = vmul.f32 %v988, %v1040
        %v1057 = vmul.f32 %v990, %v1041
        %v1058 = vmul.f32 %v992, %v1042
        %v1059 = vmul.f32 %v994, %v1043
        %v1060 = vmul.f32 %v996, %v1044
        %v1061 = vpack.c.bf16 %v759, %v758
        %v1062 = vpack.c.bf16 %v761, %v760
        %v1063 = vpack.c.bf16 %v763, %v762
        %v1064 = vpack.c.bf16 %v765, %v764
        %v1065 = vpack.c.bf16 %v767, %v766
        %v1066 = vpack.c.bf16 %v769, %v768
        %v1067 = vpack.c.bf16 %v771, %v770
        %v1068 = vpack.c.bf16 %v773, %v772
        %v1069 = vpack.c.bf16 %v1046, %v1045
        %v1070 = vpack.c.bf16 %v1048, %v1047
        %v1071 = vpack.c.bf16 %v1050, %v1049
        %v1072 = vpack.c.bf16 %v1052, %v1051
        %v1073 = vpack.c.bf16 %v1054, %v1053
        %v1074 = vpack.c.bf16 %v1056, %v1055
        %v1075 = vpack.c.bf16 %v1058, %v1057
        %v1076 = vpack.c.bf16 %v1060, %v1059
        %1077 = vmatprep.subr.bf16.mxu0 0
        %1078 = vmatpush1.bf16.xpose.msra.mxu0 %v1068
        %1079 = vmatprep.subr.bf16.mxu0 0
        %1080 = vmatpush1.bf16.xpose.msra.mxu0 %v1067
        %1081 = vmatprep.subr.bf16.mxu0 0
        %1082 = vmatpush1.bf16.xpose.msra.mxu0 %v1066
        %1083 = vmatprep.subr.bf16.mxu0 0
        %1084 = vmatpush1.bf16.xpose.msra.mxu0 %v1065
        %1085 = vmatprep.subr.bf16.mxu0 0
        %1086 = vmatpush1.bf16.xpose.msra.mxu0 %v1064
        %1087 = vmatprep.subr.bf16.mxu0 0
        %1088 = vmatpush1.bf16.xpose.msra.mxu0 %v1063
        %1089 = vmatprep.subr.bf16.mxu0 0
        %1090 = vmatpush1.bf16.xpose.msra.mxu0 %v1062
        %1091 = vmatprep.subr.bf16.mxu0 0
        %1092 = vmatpush1.bf16.xpose.msra.mxu0 %v1061
        %1093 = vmatprep.subr.bf16.mxu0 0
        %1094 = vmatpush2.bf16.xpose.msra.mxu0 0
        %1095 = vmatprep.subr.bf16.mxu0 0
        %1096 = vmatpush2.bf16.xpose.msra.mxu0 0
        %1097 = vmatprep.subr.bf16.mxu0 0
        %1098 = vmatpush2.bf16.xpose.msra.mxu0 0
        %1099 = vmatprep.subr.bf16.mxu0 0
        %1100 = vmatpush2.bf16.xpose.msra.mxu0 0
        %1101 = vmatprep.subr.bf16.mxu0 0
        %1102 = vmatpush2.bf16.xpose.msra.mxu0 0
        %1103 = vmatprep.subr.bf16.mxu0 0
        %1104 = vmatpush2.bf16.xpose.msra.mxu0 0
        %1105 = vmatprep.subr.bf16.mxu0 0
        %1106 = vmatpush2.bf16.xpose.msra.mxu0 0
        %1107 = vmatprep.subr.bf16.mxu0 0
        %1108 = vmatpush2.bf16.xpose.msra.mxu0 0
        %1109 = vmatprep.mubr.bf16.mxu0 0
        %1110 = vmatmul.mubr.bf16.gmra.mxu0 %v407
        %v1111 = vpop.f32.mrf.mxu0
        %v1112 = vadd.f32 0.0, %v1111
        %v1113 = vpop.f32.mrf.mxu0
        %v1114 = vpop.f32.mrf.mxu0
        %v1115 = vadd.f32 0.0, %v1114
        %v1116 = vpop.f32.mrf.mxu0
        %1117 = vmatprep.mubr.bf16.mxu0 0
        %1118 = vmatmul.mubr.bf16.gmra.mxu0 %v408
        %v1119 = vpop.f32.mrf.mxu0
        %v1120 = vadd.f32 0.0, %v1119
        %v1121 = vpop.f32.mrf.mxu0
        %v1122 = vpop.f32.mrf.mxu0
        %v1123 = vadd.f32 0.0, %v1122
        %v1124 = vpop.f32.mrf.mxu0
        %1125 = vdwg.mxu0
        %1126 = vmatprep.subr.bf16.mxu0 0
        %1127 = vmatpush1.bf16.xpose.msra.mxu0 %v1076
        %1128 = vmatprep.subr.bf16.mxu0 0
        %1129 = vmatpush1.bf16.xpose.msra.mxu0 %v1075
        %1130 = vmatprep.subr.bf16.mxu0 0
        %1131 = vmatpush1.bf16.xpose.msra.mxu0 %v1074
        %1132 = vmatprep.subr.bf16.mxu0 0
        %1133 = vmatpush1.bf16.xpose.msra.mxu0 %v1073
        %1134 = vmatprep.subr.bf16.mxu0 0
        %1135 = vmatpush1.bf16.xpose.msra.mxu0 %v1072
        %1136 = vmatprep.subr.bf16.mxu0 0
        %1137 = vmatpush1.bf16.xpose.msra.mxu0 %v1071
        %1138 = vmatprep.subr.bf16.mxu0 0
        %1139 = vmatpush1.bf16.xpose.msra.mxu0 %v1070
        %1140 = vmatprep.subr.bf16.mxu0 0
        %1141 = vmatpush1.bf16.xpose.msra.mxu0 %v1069
        %1142 = vmatprep.subr.bf16.mxu0 0
        %1143 = vmatpush2.bf16.xpose.msra.mxu0 0
        %1144 = vmatprep.subr.bf16.mxu0 0
        %1145 = vmatpush2.bf16.xpose.msra.mxu0 0
        %1146 = vmatprep.subr.bf16.mxu0 0
        %1147 = vmatpush2.bf16.xpose.msra.mxu0 0
        %1148 = vmatprep.subr.bf16.mxu0 0
        %1149 = vmatpush2.bf16.xpose.msra.mxu0 0
        %1150 = vmatprep.subr.bf16.mxu0 0
        %1151 = vmatpush2.bf16.xpose.msra.mxu0 0
        %1152 = vmatprep.subr.bf16.mxu0 0
        %1153 = vmatpush2.bf16.xpose.msra.mxu0 0
        %1154 = vmatprep.subr.bf16.mxu0 0
        %1155 = vmatpush2.bf16.xpose.msra.mxu0 0
        %1156 = vmatprep.subr.bf16.mxu0 0
        %1157 = vmatpush2.bf16.xpose.msra.mxu0 0
        %1158 = vmatprep.mubr.bf16.mxu0 0
        %1159 = vmatmul.mubr.bf16.gmra.mxu0 %v467
        %v1160 = vpop.f32.mrf.mxu0
        %v1161 = vadd.f32 0.0, %v1160
        %v1162 = vpop.f32.mrf.mxu0
        %v1163 = vpop.f32.mrf.mxu0
        %v1164 = vadd.f32 0.0, %v1163
        %v1165 = vpop.f32.mrf.mxu0
        %1166 = vmatprep.mubr.bf16.mxu0 0
        %1167 = vmatmul.mubr.bf16.gmra.mxu0 %v468
        %v1168 = vpop.f32.mrf.mxu0
        %v1169 = vadd.f32 0.0, %v1168
        %v1170 = vpop.f32.mrf.mxu0
        %v1171 = vpop.f32.mrf.mxu0
        %v1172 = vadd.f32 0.0, %v1171
        %v1173 = vpop.f32.mrf.mxu0
        %1174 = vdwg.mxu0
        %v1175 = vpack.c.bf16 %v1164, %v1161
        %v1176 = vpack.c.bf16 %v1172, %v1169
        %1177 = vmatprep.subr.bf16.mxu0 0
        %1178 = vmatpush1.bf16.xpose.msra.mxu0 %v1068
        %1179 = vmatprep.subr.bf16.mxu0 0
        %1180 = vmatpush1.bf16.xpose.msra.mxu0 %v1067
        %1181 = vmatprep.subr.bf16.mxu0 0
        %1182 = vmatpush1.bf16.xpose.msra.mxu0 %v1066
        %1183 = vmatprep.subr.bf16.mxu0 0
        %1184 = vmatpush1.bf16.xpose.msra.mxu0 %v1065
        %1185 = vmatprep.subr.bf16.mxu0 0
        %1186 = vmatpush1.bf16.xpose.msra.mxu0 %v1064
        %1187 = vmatprep.subr.bf16.mxu0 0
        %1188 = vmatpush1.bf16.xpose.msra.mxu0 %v1063
        %1189 = vmatprep.subr.bf16.mxu0 0
        %1190 = vmatpush1.bf16.xpose.msra.mxu0 %v1062
        %1191 = vmatprep.subr.bf16.mxu0 0
        %1192 = vmatpush1.bf16.xpose.msra.mxu0 %v1061
        %1193 = vmatprep.subr.bf16.mxu0 0
        %1194 = vmatpush2.bf16.xpose.msra.mxu0 0
        %1195 = vmatprep.subr.bf16.mxu0 0
        %1196 = vmatpush2.bf16.xpose.msra.mxu0 0
        %1197 = vmatprep.subr.bf16.mxu0 0
        %1198 = vmatpush2.bf16.xpose.msra.mxu0 0
        %1199 = vmatprep.subr.bf16.mxu0 0
        %1200 = vmatpush2.bf16.xpose.msra.mxu0 0
        %1201 = vmatprep.subr.bf16.mxu0 0
        %1202 = vmatpush2.bf16.xpose.msra.mxu0 0
        %1203 = vmatprep.subr.bf16.mxu0 0
        %1204 = vmatpush2.bf16.xpose.msra.mxu0 0
        %1205 = vmatprep.subr.bf16.mxu0 0
        %1206 = vmatpush2.bf16.xpose.msra.mxu0 0
        %1207 = vmatprep.subr.bf16.mxu0 0
        %1208 = vmatpush2.bf16.xpose.msra.mxu0 0
        %1209 = vmatprep.mubr.bf16.mxu0 0
        %1210 = vmatmul.mubr.bf16.gmra.mxu0 %v1175
        %v1211 = vpop.f32.mrf.mxu0
        %v1212 = vadd.f32 0.0, %v1211
        %v1213 = vpop.f32.mrf.mxu0
        %v1214 = vpop.f32.mrf.mxu0
        %v1215 = vadd.f32 0.0, %v1214
        %v1216 = vpop.f32.mrf.mxu0
        %1217 = vmatprep.mubr.bf16.mxu0 0
        %1218 = vmatmul.mubr.bf16.gmra.mxu0 %v1176
        %v1219 = vpop.f32.mrf.mxu0
        %v1220 = vadd.f32 0.0, %v1219
        %v1221 = vpop.f32.mrf.mxu0
        %v1222 = vpop.f32.mrf.mxu0
        %v1223 = vadd.f32 0.0, %v1222
        %v1224 = vpop.f32.mrf.mxu0
        %1225 = vdwg.mxu0
        %v1226 = vunpack.c.l.bf16 %v335
        %v1227 = vunpack.c.l.bf16 %v336
        %v1228 = vunpack.c.l.bf16 %v337
        %v1229 = vunpack.c.l.bf16 %v338
        %1230 = vst [vmem:[%s308] sm:$0xf] %v335
        %1231 = vst [vmem:[%s308 + $0x4] sm:$0xf] %v336
        %1232 = vst [vmem:[%s308 + $0x8] sm:$0xf] %v337
        %1233 = vst [vmem:[%s308 + $0xc] sm:$0xf] %v338
        %v1234 = vpack.c.bf16 %v1115, %v1112
        %v1235 = vpack.c.bf16 %v1123, %v1120
        %v1238 = vunpack.c.l.b16 %v1234
        %v1239 = vunpack.c.h.b16 %v1234
        %v1240 = vunpack.c.l.b16 %v1235
        %v1241 = vunpack.c.h.b16 %v1235
        %v1242 = vpack.c.b16 %v1238, %v1238
        %v1243 = vpack.c.b16 %v1239, %v1239
        %v1244 = vpack.c.b16 %v1240, %v1240
        %v1245 = vpack.c.b16 %v1241, %v1241
        %1250 = vst [vmem:[%s308 + $0x10] sm:$0xf] %v1242
        %1251 = vst [vmem:[%s308 + $0x14] sm:$0xf] %v1243
        %1252 = vst [vmem:[%s308 + $0x18] sm:$0xf] %v1244
        %1253 = vst [vmem:[%s308 + $0x1c] sm:$0xf] %v1245
        %v1254 = vmul.f32 %v1226, %v1112
        %v1255 = vmul.f32 %v1227, %v1115
        %v1256 = vmul.f32 %v1228, %v1120
        %v1257 = vmul.f32 %v1229, %v1123
        %v1258 = vpack.c.bf16 %v1255, %v1254
        %v1259 = vpack.c.bf16 %v1257, %v1256
        %v1262 = vunpack.c.l.b16 %v1258
        %v1263 = vunpack.c.h.b16 %v1258
        %v1264 = vunpack.c.l.b16 %v1259
        %v1265 = vunpack.c.h.b16 %v1259
        %v1266 = vpack.c.b16 %v1262, %v1262
        %v1267 = vpack.c.b16 %v1263, %v1263
        %v1268 = vpack.c.b16 %v1264, %v1264
        %v1269 = vpack.c.b16 %v1265, %v1265
        %1274 = vst [vmem:[%s308 + $0x20] sm:$0xf] %v1266
        %1275 = vst [vmem:[%s308 + $0x24] sm:$0xf] %v1267
        %1276 = vst [vmem:[%s308 + $0x28] sm:$0xf] %v1268
        %1277 = vst [vmem:[%s308 + $0x2c] sm:$0xf] %v1269
        %v1278 = vmul.f32 %v1226, %v1212
        %v1279 = vmul.f32 %v1227, %v1215
        %v1280 = vmul.f32 %v1228, %v1220
        %v1281 = vmul.f32 %v1229, %v1223
        %v1282 = vpack.c.bf16 %v1279, %v1278
        %v1283 = vpack.c.bf16 %v1281, %v1280
        %v1286 = vunpack.c.l.b16 %v1282
        %v1287 = vunpack.c.h.b16 %v1282
        %v1288 = vunpack.c.l.b16 %v1283
        %v1289 = vunpack.c.h.b16 %v1283
        %v1290 = vpack.c.b16 %v1286, %v1286
        %v1291 = vpack.c.b16 %v1287, %v1287
        %v1292 = vpack.c.b16 %v1288, %v1288
        %v1293 = vpack.c.b16 %v1289, %v1289
        %1298 = vst [vmem:[%s308 + $0x30] sm:$0xf] %v1290
        %1299 = vst [vmem:[%s308 + $0x34] sm:$0xf] %v1291
        %1300 = vst [vmem:[%s308 + $0x38] sm:$0xf] %v1292
        %1301 = vst [vmem:[%s308 + $0x3c] sm:$0xf] %v1293
        %s1302 = sand.u32 %s196, 1
        %s1303 = scalar_lea.sflag [#allocation3], %s1302
        %s1304 = sand.u32 %s196, 1
        %s1305 = smul.addr %s1304, 64
        %s1306 = scalar_lea.vmem [#allocation2], %s1305
        // Predicated region
        $region49: #{tpu_custom_call.1} parent=47 // pred_check
          %p1307 = pneg %p206
        $region50: #{tpu_custom_call.1} parent=47 // pred_check_branch
          %1309 = sbr.rel (%p1307) target = $region52
        $region51: #{tpu_custom_call.1} parent=47 // pred_region
          %s1311 = ssub.s32 1024, 1024
          %1312 = vsyncadd %s1303, %s1311
          %s1313 = smul.addr %s21, 16
          %s1314 = smul.addr %s1313, 64
          %s1315 = scalar_lea.hbm %s7, %s1314
          %s1316 = sshll.u32 %s1306, 4
          %s1317 = int_to_ptr.vmem [resolvable:$true] %s1316
          %1322 = dma.vmem_to_hbm [thread:$0]  %s1317, 1024, %s1315, %s1303, 64, 64, 4
        $region52: #{tpu_custom_call.1} parent=47 // pred_fallthru
          _
      $region48: #{tpu_custom_call.1} parent=5 // pred_fallthru
        _
      %p1323 = scmp.le.s32.totalorder 2, %s16
      // Predicated region
      $region53: #{tpu_custom_call.1} parent=5 // pred_check
        %p1324 = pneg %p1323
      $region54: #{tpu_custom_call.1} parent=5 // pred_check_branch
        %1326 = sbr.rel (%p1324) target = $region56
      $region55: #{tpu_custom_call.1} parent=5 // pred_region
        %s1327 = ssub.s32 %s16, 2
        // Predicated region
        $region57: #{tpu_custom_call.1} parent=55 // pred_check
          %p1328 = pneg %p212
        $region58: #{tpu_custom_call.1} parent=55 // pred_check_branch
          %1330 = sbr.rel (%p1328) target = $region60
        $region59: #{tpu_custom_call.1} parent=55 // pred_region
          %s1331 = sand.u32 %s197, 1
          %s1332 = scalar_lea.sflag [#allocation3], %s1331
          %s1333 = sand.u32 %s197, 1
          %s1334 = smul.addr %s1333, 64
          %s1335 = scalar_lea.vmem [#allocation2], %s1334
          %1336 = dma.done %s1332, 1024
        $region60: #{tpu_custom_call.1} parent=55 // pred_fallthru
          _
      $region56: #{tpu_custom_call.1} parent=5 // pred_fallthru
        _
    $region6: #{tpu_custom_call.1} parent=1 // loop_footer
      %s20 = sadd.s32 1, %s16
    $region7: #{tpu_custom_call.1} parent=1 // loop_footer_branch
      %15 = sbr.rel target = $region3
    $region8: #{tpu_custom_call.1} parent=1 // loop_exit
      _
    %1337 = vsyncpa [#allocation3], 1
    %s1338 = scalar_lea.sflag [#allocation3], 1
    %1339 = vsyncpa %s1338, 1

</llo_original>
